<compile_context>
chip_gen: v5e
topology: v5e:2x2
jax: 0.10.0
libtpu: 0.0.40
codegen_flags: <defaults>
</compile_context>

<pallas_src>
import math
from functools import partial

import jax
import jax.numpy as jnp
from jax import lax
from jax.experimental import pallas as pl
from jax.experimental.pallas import tpu as pltpu

_NEG_INF = -1.0e9
_VMEM_LIMIT = 32 * 1024 * 1024


# ------------------------------------------------------------------
# In-kernel building blocks (traced inside the fused layer kernels)
# ------------------------------------------------------------------

def _layer_norm(y, g, b, inv_d):
    """Single-pass LayerNorm (sum + sum-of-squares), eps=1e-5 like nn.LayerNorm."""
    mean = jnp.sum(y, axis=-1, keepdims=True) * inv_d
    msq = jnp.sum(y * y, axis=-1, keepdims=True) * inv_d
    var = msq - mean * mean
    return (y - mean) * lax.rsqrt(var + 1e-5) * g + b


def _mha_sub(x_q, x_kv, bias, wq_ref, wkv_ref, wo_ref, g_ref, b_ref,
             ctx_sc, attn_ref, *, n_heads, d_q, d_k, d_v, scale, inv_d):
    """Fused MHA: QKV proj -> masked softmax attention -> out proj -> +res -> LN.

    x_q: [Lq, D] f32, x_kv: [Lk, D] f32, bias: [Lq, Lk] additive mask (0/-1e9).
    ctx_sc: VMEM scratch [Lq, H*d_v] f32 (lane-packed head slab).
    attn_ref: output ref, block (1, Lq, H*Lk) — lane-dense attn-prob slab.
    """
    lk = x_kv.shape[0]
    xq16 = x_q.astype(jnp.bfloat16)
    xkv16 = x_kv.astype(jnp.bfloat16)

    # Fused projections (K and V weights concatenated -> one MXU pass over xkv).
    q = jnp.dot(xq16, wq_ref[...], preferred_element_type=jnp.float32)     # [Lq, H*dq]
    kv = jnp.dot(xkv16, wkv_ref[...], preferred_element_type=jnp.float32)  # [Lk, H*(dk+dv)]
    k = kv[:, : n_heads * d_k]
    v = kv[:, n_heads * d_k:].astype(jnp.bfloat16)

    for h in range(n_heads):                      # static unroll over heads
        qh = q[:, h * d_q:(h + 1) * d_q].astype(jnp.bfloat16)
        kh = k[:, h * d_k:(h + 1) * d_k].astype(jnp.bfloat16)
        vh = v[:, h * d_v:(h + 1) * d_v]
        # Contract last dims of q and k directly (no explicit transpose of k).
        s = lax.dot_general(qh, kh, (((1,), (1,)), ((), ())),
                            preferred_element_type=jnp.float32) * scale + bias
        s = s - jnp.max(s, axis=-1, keepdims=True)
        e = jnp.exp(s)
        p = e * pl.reciprocal(jnp.sum(e, axis=-1, keepdims=True), approx=True)
        attn_ref[0, :, h * lk:(h + 1) * lk] = p
        ctx_sc[:, h * d_v:(h + 1) * d_v] = jnp.dot(
            p.astype(jnp.bfloat16), vh, preferred_element_type=jnp.float32)

    o = jnp.dot(ctx_sc[...].astype(jnp.bfloat16), wo_ref[...],
                preferred_element_type=jnp.float32)                         # [Lq, D]
    return _layer_norm(o + x_q, g_ref[...], b_ref[...], inv_d)


def _ffn_sub(x, w1_ref, w2_ref, g_ref, b_ref, inv_d):
    """PoswiseFeedForwardNet: Linear -> ReLU -> Linear, residual + LayerNorm."""
    h = jnp.dot(x.astype(jnp.bfloat16), w1_ref[...],
                preferred_element_type=jnp.float32)
    h = jnp.maximum(h, 0.0).astype(jnp.bfloat16)
    o = jnp.dot(h, w2_ref[...], preferred_element_type=jnp.float32)
    return _layer_norm(o + x, g_ref[...], b_ref[...], inv_d)


# ------------------------------------------------------------------
# Fused layer kernels
# ------------------------------------------------------------------

def _enc_layer_kernel(x_ref, bias_ref,
                      wq_ref, wkv_ref, wo_ref, g1_ref, b1_ref,
                      w1_ref, w2_ref, g2_ref, b2_ref,
                      out_ref, attn_ref, ctx_sc, *,
                      n_heads, d_q, d_k, d_v, scale, inv_d):
    x = x_ref[0]                                  # [Ls, D]
    y = _mha_sub(x, x, bias_ref[0], wq_ref, wkv_ref, wo_ref, g1_ref, b1_ref,
                 ctx_sc, attn_ref, n_heads=n_heads, d_q=d_q, d_k=d_k, d_v=d_v,
                 scale=scale, inv_d=inv_d)
    out_ref[0] = _ffn_sub(y, w1_ref, w2_ref, g2_ref, b2_ref, inv_d)


def _dec_layer_kernel(x_ref, enc_ref, sbias_ref, ebias_ref,
                      sa_wq, sa_wkv, sa_wo, sa_g, sa_b,
                      ca_wq, ca_wkv, ca_wo, ca_g, ca_b,
                      ff_w1, ff_w2, ff_g, ff_b,
                      out_ref, sattn_ref, eattn_ref, ctx_sc, *,
                      n_heads, d_q, d_k, d_v, scale, inv_d):
    x = x_ref[0]                                  # [Lt, D]
    enc = enc_ref[0]                              # [Ls, D]
    y = _mha_sub(x, x, sbias_ref[0], sa_wq, sa_wkv, sa_wo, sa_g, sa_b,
                 ctx_sc, sattn_ref, n_heads=n_heads, d_q=d_q, d_k=d_k, d_v=d_v,
                 scale=scale, inv_d=inv_d)
    y = _mha_sub(y, enc, ebias_ref[0], ca_wq, ca_wkv, ca_wo, ca_g, ca_b,
                 ctx_sc, eattn_ref, n_heads=n_heads, d_q=d_q, d_k=d_k, d_v=d_v,
                 scale=scale, inv_d=inv_d)
    out_ref[0] = _ffn_sub(y, ff_w1, ff_w2, ff_g, ff_b, inv_d)


def _proj_kernel(x_ref, w_ref, o_ref):
    o_ref[0] = jnp.dot(x_ref[0].astype(jnp.bfloat16), w_ref[...],
                       preferred_element_type=jnp.float32)


# ------------------------------------------------------------------
# Wrappers (pallas_call plumbing)
# ------------------------------------------------------------------

def _wspec(shape):
    return pl.BlockSpec(shape, lambda b: (0, 0))


def encoder_layer(lp, x, bias, cfg):
    """Fused EncoderLayer: self-MHA + FFN, one pallas_call per layer."""
    B, Ls, D = x.shape
    H, dq, dk, dv, dff = (cfg["n_heads"], cfg["d_q"], cfg["d_k"],
                          cfg["d_v"], cfg["d_ff"])
    sa, ff = lp["self_attn"], lp["ffn"]
    kernel = partial(_enc_layer_kernel, n_heads=H, d_q=dq, d_k=dk, d_v=dv,
                     scale=1.0 / math.sqrt(dk), inv_d=1.0 / D)

    flops = 2 * B * Ls * (D * H * (dq + dk + dv) + H * Ls * (dk + dv)
                          + H * dv * D + 2 * D * dff)
    transc = B * (H * Ls * Ls + 2 * Ls)
    bytes_acc = (4 * B * Ls * (2 * D + Ls + H * Ls)
                 + 2 * (D * H * (dq + dk + dv) + H * dv * D + 2 * D * dff)
                 + 16 * D)

    out, attn = pl.pallas_call(
        kernel,
        out_shape=(jax.ShapeDtypeStruct((B, Ls, D), jnp.float32),
                   jax.ShapeDtypeStruct((B, Ls, H * Ls), jnp.float32)),
        grid=(B,),
        in_specs=[
            pl.BlockSpec((1, Ls, D), lambda b: (b, 0, 0)),      # x
            pl.BlockSpec((1, Ls, Ls), lambda b: (b, 0, 0)),     # mask bias
            _wspec((D, H * dq)),                                # W_Q
            _wspec((D, H * (dk + dv))),                         # W_K || W_V
            _wspec((H * dv, D)),                                # fc
            _wspec((1, D)), _wspec((1, D)),                     # ln1 gamma/beta
            _wspec((D, dff)), _wspec((dff, D)),                 # FFN W1, W2
            _wspec((1, D)), _wspec((1, D)),                     # ln2 gamma/beta
        ],
        out_specs=(pl.BlockSpec((1, Ls, D), lambda b: (b, 0, 0)),
                   pl.BlockSpec((1, Ls, H * Ls), lambda b: (b, 0, 0))),
        scratch_shapes=[pltpu.VMEM((Ls, H * dv), jnp.float32)],
        compiler_params=pltpu.CompilerParams(
            dimension_semantics=("parallel",),
            vmem_limit_bytes=_VMEM_LIMIT),
        cost_estimate=pl.CostEstimate(flops=int(flops), transcendentals=int(transc),
                                      bytes_accessed=int(bytes_acc)),
    )(x, bias, sa["W_Q"], sa["W_KV"], sa["fc"], sa["ln_g"], sa["ln_b"],
      ff["W1"], ff["W2"], ff["ln_g"], ff["ln_b"])
    attn = attn.reshape(B, Ls, H, Ls).transpose(0, 2, 1, 3)     # [B, H, Ls, Ls]
    return out, attn


def decoder_layer(lp, dec_x, enc_x, self_bias, enc_bias, cfg):
    """Fused DecoderLayer: self-MHA + cross-MHA + FFN, one pallas_call."""
    B, Lt, D = dec_x.shape
    Ls = enc_x.shape[1]
    H, dq, dk, dv, dff = (cfg["n_heads"], cfg["d_q"], cfg["d_k"],
                          cfg["d_v"], cfg["d_ff"])
    sa, ca, ff = lp["self_attn"], lp["enc_attn"], lp["ffn"]
    kernel = partial(_dec_layer_kernel, n_heads=H, d_q=dq, d_k=dk, d_v=dv,
                     scale=1.0 / math.sqrt(dk), inv_d=1.0 / D)

    flops = 2 * B * Lt * (2 * D * H * (dq + dk + dv)
                          + H * (Lt + Ls) * (dk + dv)
                          + 2 * H * dv * D + 2 * D * dff)
    transc = B * (H * Lt * (Lt + Ls) + 3 * Lt)
    bytes_acc = (4 * B * (Lt * (2 * D + Lt + Ls + H * Lt + H * Ls) + Ls * D)
                 + 4 * (D * H * (dq + dk + dv) + H * dv * D)
                 + 4 * D * dff + 24 * D)

    out, sattn, eattn = pl.pallas_call(
        kernel,
        out_shape=(jax.ShapeDtypeStruct((B, Lt, D), jnp.float32),
                   jax.ShapeDtypeStruct((B, Lt, H * Lt), jnp.float32),
                   jax.ShapeDtypeStruct((B, Lt, H * Ls), jnp.float32)),
        grid=(B,),
        in_specs=[
            pl.BlockSpec((1, Lt, D), lambda b: (b, 0, 0)),      # dec_x
            pl.BlockSpec((1, Ls, D), lambda b: (b, 0, 0)),      # enc_x
            pl.BlockSpec((1, Lt, Lt), lambda b: (b, 0, 0)),     # self-attn bias
            pl.BlockSpec((1, Lt, Ls), lambda b: (b, 0, 0)),     # cross-attn bias
            _wspec((D, H * dq)), _wspec((D, H * (dk + dv))), _wspec((H * dv, D)),
            _wspec((1, D)), _wspec((1, D)),                     # self-attn MHA
            _wspec((D, H * dq)), _wspec((D, H * (dk + dv))), _wspec((H * dv, D)),
            _wspec((1, D)), _wspec((1, D)),                     # cross-attn MHA
            _wspec((D, dff)), _wspec((dff, D)),
            _wspec((1, D)), _wspec((1, D)),                     # FFN
        ],
        out_specs=(pl.BlockSpec((1, Lt, D), lambda b: (b, 0, 0)),
                   pl.BlockSpec((1, Lt, H * Lt), lambda b: (b, 0, 0)),
                   pl.BlockSpec((1, Lt, H * Ls), lambda b: (b, 0, 0))),
        scratch_shapes=[pltpu.VMEM((Lt, H * dv), jnp.float32)],
        compiler_params=pltpu.CompilerParams(
            dimension_semantics=("parallel",),
            vmem_limit_bytes=_VMEM_LIMIT),
        cost_estimate=pl.CostEstimate(flops=int(flops), transcendentals=int(transc),
                                      bytes_accessed=int(bytes_acc)),
    )(dec_x, enc_x, self_bias, enc_bias,
      sa["W_Q"], sa["W_KV"], sa["fc"], sa["ln_g"], sa["ln_b"],
      ca["W_Q"], ca["W_KV"], ca["fc"], ca["ln_g"], ca["ln_b"],
      ff["W1"], ff["W2"], ff["ln_g"], ff["ln_b"])
    sattn = sattn.reshape(B, Lt, H, Lt).transpose(0, 2, 1, 3)   # [B, H, Lt, Lt]
    eattn = eattn.reshape(B, Lt, H, Ls).transpose(0, 2, 1, 3)   # [B, H, Lt, Ls]
    return out, sattn, eattn


def project(x, w):
    """Final vocabulary projection, N-tiled.  x: [B, L, D], w: [D, V] bf16."""
    B, L, D = x.shape
    V = w.shape[1]
    if V % 128 == 0:
        tn = min(V, 512)
        while V % tn:
            tn -= 128
    else:
        tn = V                                    # small vocab: one full block
    out = pl.pallas_call(
        _proj_kernel,
        out_shape=jax.ShapeDtypeStruct((B, L, V), jnp.float32),
        grid=(B, V // tn),
        in_specs=[pl.BlockSpec((1, L, D), lambda b, n: (b, 0, 0)),
                  pl.BlockSpec((D, tn), lambda b, n: (0, n))],
        out_specs=pl.BlockSpec((1, L, tn), lambda b, n: (b, 0, n)),
        compiler_params=pltpu.CompilerParams(
            dimension_semantics=("parallel", "parallel"),
            vmem_limit_bytes=_VMEM_LIMIT),
        cost_estimate=pl.CostEstimate(flops=2 * B * L * D * V, transcendentals=0,
                                      bytes_accessed=4 * B * L * (D + V) + 2 * D * V),
    )(x, w)
    return out.reshape(B * L, V)


# ------------------------------------------------------------------
# Glue: masks, positional encoding, parameters
# ------------------------------------------------------------------

def get_attn_pad_mask(q_len_list, k_len_list):
    len_q = max(q_len_list)
    len_k = max(k_len_list)
    B = len(q_len_list)
    k_lens = jnp.asarray(k_len_list, jnp.int32)[:, None]              # [B, 1]
    key_idx = jnp.arange(len_k, dtype=jnp.int32)[None, :]              # [1, len_k]
    row = (key_idx >= k_lens).astype(jnp.float32)                      # [B, len_k]
    return jnp.broadcast_to(row[:, None, :], (B, len_q, len_k))        # [B, len_q, len_k]


def get_attn_subsequence_mask(B, L):
    return jnp.triu(jnp.ones((B, L, L), jnp.float32), k=1)


def make_pe(max_len, d_model):
    position = jnp.arange(max_len, dtype=jnp.float32)[:, None]
    div_term = jnp.exp(jnp.arange(0, d_model, 2, dtype=jnp.float32)
                       * (-math.log(10000.0) / d_model))
    pe = jnp.zeros((max_len, d_model), jnp.float32)
    pe = pe.at[:, 0::2].set(jnp.sin(position * div_term))
    pe = pe.at[:, 1::2].set(jnp.cos(position * div_term))
    return pe


def init_params(key, cfg):
    D, H = cfg["d_model"], cfg["n_heads"]
    dq, dk, dv = cfg["d_q"], cfg["d_k"], cfg["d_v"]
    dff, vocab = cfg["d_ff"], cfg["taget_vocab_size"]
    nl, max_len = cfg["n_layers"], cfg["max_len"]
    keys = iter(jax.random.split(key, 256))

    def lin(i, o):
        w = jax.random.normal(next(keys), (i, o), jnp.float32) * 0.05
        return w.astype(jnp.bfloat16)             # MXU-friendly weight storage

    def mha():
        w_k = lin(D, H * dk)
        w_v = lin(D, H * dv)
        return dict(W_Q=lin(D, H * dq),
                    W_KV=jnp.concatenate([w_k, w_v], axis=1),   # fused KV weight
                    fc=lin(H * dv, D),
                    ln_g=jnp.ones((1, D), jnp.float32),
                    ln_b=jnp.zeros((1, D), jnp.float32))

    def ffn():
        return dict(W1=lin(D, dff), W2=lin(dff, D),
                    ln_g=jnp.ones((1, D), jnp.float32),
                    ln_b=jnp.zeros((1, D), jnp.float32))

    enc_layers = [dict(self_attn=mha(), ffn=ffn()) for _ in range(nl)]
    dec_layers = [dict(self_attn=mha(), enc_attn=mha(), ffn=ffn()) for _ in range(nl)]
    return dict(enc_layers=enc_layers, dec_layers=dec_layers,
                projection=lin(D, vocab), pe=make_pe(max_len, D))


# ------------------------------------------------------------------
# Forward pass
# ------------------------------------------------------------------

def transformer_forward(params, enc_inputs, len_inputs, dec_inputs, len_dec_inputs, cfg):
    pe = params["pe"]

    # ---------------- Encoder ----------------
    B, Ls, D = enc_inputs.shape
    enc_out = enc_inputs + pe[:Ls][None, :, :]      # dropout is identity (inference)
    enc_self_bias = get_attn_pad_mask(len_inputs, len_inputs) * _NEG_INF
    enc_self_attns = []
    for lp in params["enc_layers"]:
        enc_out, a = encoder_layer(lp, enc_out, enc_self_bias, cfg)
        enc_self_attns.append(a)

    # ---------------- Decoder ----------------
    Bt, Lt, _ = dec_inputs.shape
    dec_out = dec_inputs + pe[:Lt][None, :, :]
    pad = get_attn_pad_mask(len_dec_inputs, len_dec_inputs)
    sub = get_attn_subsequence_mask(Bt, Lt)
    dec_self_bias = ((pad + sub) > 0).astype(jnp.float32) * _NEG_INF
    dec_enc_bias = get_attn_pad_mask(len_dec_inputs, len_inputs) * _NEG_INF
    dec_self_attns, dec_enc_attns = [], []
    for lp in params["dec_layers"]:
        dec_out, a1, a2 = decoder_layer(lp, dec_out, enc_out,
                                        dec_self_bias, dec_enc_bias, cfg)
        dec_self_attns.append(a1)
        dec_enc_attns.append(a2)

    # ---------------- Projection ----------------
    logits = project(dec_out, params["projection"])       # [B*Lt, vocab]
    return logits, enc_self_attns, dec_self_attns, dec_enc_attns


# ------------------------------------------------------------------
# Demo
# ------------------------------------------------------------------

if __name__ == "__main__":
    cfg = dict(d_model=32, n_heads=4, d_q=8, d_k=8, d_v=8, d_ff=64,
               n_layers=2, taget_vocab_size=16, max_len=16, dropout=0.1)

    key = jax.random.PRNGKey(0)
    kp, ke, kd = jax.random.split(key, 3)
    params = init_params(kp, cfg)

    B, src_len, tgt_len = 2, 8, 8
    enc_inputs = jax.random.normal(ke, (B, src_len, cfg["d_model"]), jnp.float32)
    dec_inputs = jax.random.normal(kd, (B, tgt_len, cfg["d_model"]), jnp.float32)
    len_inputs = [8, 6]        # valid source lengths per batch
    len_dec_inputs = [8, 5]    # valid target lengths per batch

    logits, enc_attns, dec_self_attns, dec_enc_attns = transformer_forward(
        params, enc_inputs, len_inputs, dec_inputs, len_dec_inputs, cfg)
    jax.block_until_ready(logits)

    assert logits.shape == (B * tgt_len, cfg["taget_vocab_size"])
    assert enc_attns[0].shape == (B, cfg["n_heads"], src_len, src_len)
    assert dec_self_attns[0].shape == (B, cfg["n_heads"], tgt_len, tgt_len)
    assert dec_enc_attns[0].shape == (B, cfg["n_heads"], tgt_len, src_len)
    assert bool(jnp.all(jnp.isfinite(logits)))
    print("KERNEL_OK")
</pallas_src>

<mosaic_0001>
module attributes {stable_mosaic.version = 11 : i64} {
  func.func @_enc_layer_kernel(%arg0: i32, %arg1: memref<1x8x32xf32, #tpu.memory_space<vmem>>, %arg2: memref<1x8x8xf32, #tpu.memory_space<vmem>>, %arg3: memref<32x32xbf16, #tpu.memory_space<vmem>>, %arg4: memref<32x64xbf16, #tpu.memory_space<vmem>>, %arg5: memref<32x32xbf16, #tpu.memory_space<vmem>>, %arg6: memref<1x32xf32, #tpu.memory_space<vmem>>, %arg7: memref<1x32xf32, #tpu.memory_space<vmem>>, %arg8: memref<32x64xbf16, #tpu.memory_space<vmem>>, %arg9: memref<64x32xbf16, #tpu.memory_space<vmem>>, %arg10: memref<1x32xf32, #tpu.memory_space<vmem>>, %arg11: memref<1x32xf32, #tpu.memory_space<vmem>>, %arg12: memref<1x8x32xf32, #tpu.memory_space<vmem>>, %arg13: memref<1x8x32xf32, #tpu.memory_space<vmem>>, %arg14: memref<8x32xf32, #tpu.memory_space<vmem>>) attributes {dimension_semantics = [#tpu.dimension_semantics<parallel>], iteration_bounds = array<i64: 2>, scalar_prefetch = 0 : i64, scratch_operands = 1 : i64, tpu.core_type = #tpu.core_type<tc>, window_params = [{transform_indices = @transform_0, window_bounds = array<i64: 1, 8, 32>}, {transform_indices = @transform_1, window_bounds = array<i64: 1, 8, 8>}, {pipeline_mode = #tpu.pipeline_mode<synchronous>, transform_indices = @transform_2, window_bounds = array<i64: 32, 32>}, {pipeline_mode = #tpu.pipeline_mode<synchronous>, transform_indices = @transform_3, window_bounds = array<i64: 32, 64>}, {pipeline_mode = #tpu.pipeline_mode<synchronous>, transform_indices = @transform_4, window_bounds = array<i64: 32, 32>}, {pipeline_mode = #tpu.pipeline_mode<synchronous>, transform_indices = @transform_5, window_bounds = array<i64: 1, 32>}, {pipeline_mode = #tpu.pipeline_mode<synchronous>, transform_indices = @transform_6, window_bounds = array<i64: 1, 32>}, {pipeline_mode = #tpu.pipeline_mode<synchronous>, transform_indices = @transform_7, window_bounds = array<i64: 32, 64>}, {pipeline_mode = #tpu.pipeline_mode<synchronous>, transform_indices = @transform_8, window_bounds = array<i64: 64, 32>}, {pipeline_mode = #tpu.pipeline_mode<synchronous>, transform_indices = @transform_9, window_bounds = array<i64: 1, 32>}, {pipeline_mode = #tpu.pipeline_mode<synchronous>, transform_indices = @transform_10, window_bounds = array<i64: 1, 32>}, {transform_indices = @transform_11, window_bounds = array<i64: 1, 8, 32>}, {transform_indices = @transform_12, window_bounds = array<i64: 1, 8, 32>}]} {
    %c0 = arith.constant 0 : index
    %c0_0 = arith.constant 0 : index
    %c0_1 = arith.constant 0 : index
    %0 = vector.load %arg1[%c0, %c0_0, %c0_1] : memref<1x8x32xf32, #tpu.memory_space<vmem>>, vector<1x8x32xf32>
    %1 = vector.shape_cast %0 : vector<1x8x32xf32> to vector<8x32xf32>
    %c0_2 = arith.constant 0 : index
    %c0_3 = arith.constant 0 : index
    %c0_4 = arith.constant 0 : index
    %2 = vector.load %arg2[%c0_2, %c0_3, %c0_4] : memref<1x8x8xf32, #tpu.memory_space<vmem>>, vector<1x8x8xf32>
    %3 = vector.shape_cast %2 : vector<1x8x8xf32> to vector<8x8xf32>
    %4 = arith.truncf %1 : vector<8x32xf32> to vector<8x32xbf16>
    %5 = arith.truncf %1 : vector<8x32xf32> to vector<8x32xbf16>
    %c0_5 = arith.constant 0 : index
    %c0_6 = arith.constant 0 : index
    %6 = vector.load %arg3[%c0_5, %c0_6] : memref<32x32xbf16, #tpu.memory_space<vmem>>, vector<32x32xbf16>
    %cst = arith.constant dense<0.000000e+00> : vector<8x32xf32>
    %7 = tpu.matmul %4, %6, %cst {dimension_numbers = #tpu.dot_dimension_numbers<[1], [0], [0], [1], [0, 0, 1, 1], [], []>} : vector<8x32xbf16>, vector<32x32xbf16>, vector<8x32xf32> -> vector<8x32xf32>
    %c0_7 = arith.constant 0 : index
    %c0_8 = arith.constant 0 : index
    %8 = vector.load %arg4[%c0_7, %c0_8] : memref<32x64xbf16, #tpu.memory_space<vmem>>, vector<32x64xbf16>
    %cst_9 = arith.constant dense<0.000000e+00> : vector<8x64xf32>
    %9 = tpu.matmul %5, %8, %cst_9 {dimension_numbers = #tpu.dot_dimension_numbers<[1], [0], [0], [1], [0, 0, 1, 1], [], []>} : vector<8x32xbf16>, vector<32x64xbf16>, vector<8x64xf32> -> vector<8x64xf32>
    %10 = vector.extract_strided_slice %9 {offsets = [0, 0], sizes = [8, 32], strides = [1, 1]} : vector<8x64xf32> to vector<8x32xf32>
    %11 = vector.extract_strided_slice %9 {offsets = [0, 32], sizes = [8, 32], strides = [1, 1]} : vector<8x64xf32> to vector<8x32xf32>
    %12 = arith.truncf %11 : vector<8x32xf32> to vector<8x32xbf16>
    %13 = vector.extract_strided_slice %7 {offsets = [0, 0], sizes = [8, 8], strides = [1, 1]} : vector<8x32xf32> to vector<8x8xf32>
    %14 = arith.truncf %13 : vector<8x8xf32> to vector<8x8xbf16>
    %15 = vector.extract_strided_slice %10 {offsets = [0, 0], sizes = [8, 8], strides = [1, 1]} : vector<8x32xf32> to vector<8x8xf32>
    %16 = arith.truncf %15 : vector<8x8xf32> to vector<8x8xbf16>
    %17 = vector.extract_strided_slice %12 {offsets = [0, 0], sizes = [8, 8], strides = [1, 1]} : vector<8x32xbf16> to vector<8x8xbf16>
    %cst_10 = arith.constant dense<0.000000e+00> : vector<8x8xf32>
    %18 = tpu.matmul %14, %16, %cst_10 {dimension_numbers = #tpu.dot_dimension_numbers<[1], [1], [0], [0], [0, 0, 1, 0], [], []>} : vector<8x8xbf16>, vector<8x8xbf16>, vector<8x8xf32> -> vector<8x8xf32>
    %cst_11 = arith.constant 0.353553385 : f32
    %19 = vector.broadcast %cst_11 : f32 to vector<8x8xf32>
    %20 = arith.mulf %18, %19 : vector<8x8xf32>
    %21 = arith.addf %20, %3 : vector<8x8xf32>
    %cst_12 = arith.constant dense<0xFF800000> : vector<8xf32>
    %22 = vector.multi_reduction <maximumf>, %21, %cst_12 [1] : vector<8x8xf32> to vector<8xf32>
    %23 = vector.shape_cast %22 : vector<8xf32> to vector<8x1xf32>
    %24 = vector.broadcast %23 : vector<8x1xf32> to vector<8x8xf32>
    %25 = arith.subf %21, %24 : vector<8x8xf32>
    %26 = math.exp %25 : vector<8x8xf32>
    %cst_13 = arith.constant dense<0.000000e+00> : vector<8xf32>
    %27 = vector.multi_reduction <add>, %26, %cst_13 [1] : vector<8x8xf32> to vector<8xf32>
    %28 = vector.shape_cast %27 : vector<8xf32> to vector<8x1xf32>
    %29 = tpu.reciprocal %28 {approx = true} : vector<8x1xf32> -> vector<8x1xf32>
    %30 = vector.broadcast %29 : vector<8x1xf32> to vector<8x8xf32>
    %31 = arith.mulf %26, %30 : vector<8x8xf32>
    %c0_14 = arith.constant 0 : index
    %c0_15 = arith.constant 0 : index
    %c0_16 = arith.constant 0 : index
    %32 = vector.load %arg13[%c0_14, %c0_15, %c0_16] : memref<1x8x32xf32, #tpu.memory_space<vmem>>, vector<1x8x8xf32>
    %33 = vector.shape_cast %32 : vector<1x8x8xf32> to vector<8x8xf32>
    %34 = vector.shape_cast %31 : vector<8x8xf32> to vector<1x8x8xf32>
    tpu.vector_store %arg13[%c0_14, %c0_15, %c0_16], %34 {strides = array<i32>} : memref<1x8x32xf32, #tpu.memory_space<vmem>>, vector<1x8x8xf32>,
    %35 = arith.truncf %31 : vector<8x8xf32> to vector<8x8xbf16>
    %cst_17 = arith.constant dense<0.000000e+00> : vector<8x8xf32>
    %36 = tpu.matmul %35, %17, %cst_17 {dimension_numbers = #tpu.dot_dimension_numbers<[1], [0], [0], [1], [0, 0, 1, 1], [], []>} : vector<8x8xbf16>, vector<8x8xbf16>, vector<8x8xf32> -> vector<8x8xf32>
    %c0_18 = arith.constant 0 : index
    %c0_19 = arith.constant 0 : index
    %37 = vector.load %arg14[%c0_18, %c0_19] : memref<8x32xf32, #tpu.memory_space<vmem>>, vector<8x8xf32>
    tpu.vector_store %arg14[%c0_18, %c0_19], %36 {strides = array<i32>} : memref<8x32xf32, #tpu.memory_space<vmem>>, vector<8x8xf32>,
    %38 = vector.extract_strided_slice %7 {offsets = [0, 8], sizes = [8, 8], strides = [1, 1]} : vector<8x32xf32> to vector<8x8xf32>
    %39 = arith.truncf %38 : vector<8x8xf32> to vector<8x8xbf16>
    %40 = vector.extract_strided_slice %10 {offsets = [0, 8], sizes = [8, 8], strides = [1, 1]} : vector<8x32xf32> to vector<8x8xf32>
    %41 = arith.truncf %40 : vector<8x8xf32> to vector<8x8xbf16>
    %42 = vector.extract_strided_slice %12 {offsets = [0, 8], sizes = [8, 8], strides = [1, 1]} : vector<8x32xbf16> to vector<8x8xbf16>
    %cst_20 = arith.constant dense<0.000000e+00> : vector<8x8xf32>
    %43 = tpu.matmul %39, %41, %cst_20 {dimension_numbers = #tpu.dot_dimension_numbers<[1], [1], [0], [0], [0, 0, 1, 0], [], []>} : vector<8x8xbf16>, vector<8x8xbf16>, vector<8x8xf32> -> vector<8x8xf32>
    %cst_21 = arith.constant 0.353553385 : f32
    %44 = vector.broadcast %cst_21 : f32 to vector<8x8xf32>
    %45 = arith.mulf %43, %44 : vector<8x8xf32>
    %46 = arith.addf %45, %3 : vector<8x8xf32>
    %cst_22 = arith.constant dense<0xFF800000> : vector<8xf32>
    %47 = vector.multi_reduction <maximumf>, %46, %cst_22 [1] : vector<8x8xf32> to vector<8xf32>
    %48 = vector.shape_cast %47 : vector<8xf32> to vector<8x1xf32>
    %49 = vector.broadcast %48 : vector<8x1xf32> to vector<8x8xf32>
    %50 = arith.subf %46, %49 : vector<8x8xf32>
    %51 = math.exp %50 : vector<8x8xf32>
    %cst_23 = arith.constant dense<0.000000e+00> : vector<8xf32>
    %52 = vector.multi_reduction <add>, %51, %cst_23 [1] : vector<8x8xf32> to vector<8xf32>
    %53 = vector.shape_cast %52 : vector<8xf32> to vector<8x1xf32>
    %54 = tpu.reciprocal %53 {approx = true} : vector<8x1xf32> -> vector<8x1xf32>
    %55 = vector.broadcast %54 : vector<8x1xf32> to vector<8x8xf32>
    %56 = arith.mulf %51, %55 : vector<8x8xf32>
    %c0_24 = arith.constant 0 : index
    %c0_25 = arith.constant 0 : index
    %c8 = arith.constant 8 : index
    %57 = vector.load %arg13[%c0_24, %c0_25, %c8] : memref<1x8x32xf32, #tpu.memory_space<vmem>>, vector<1x8x8xf32>
    %58 = vector.shape_cast %57 : vector<1x8x8xf32> to vector<8x8xf32>
    %59 = vector.shape_cast %56 : vector<8x8xf32> to vector<1x8x8xf32>
    tpu.vector_store %arg13[%c0_24, %c0_25, %c8], %59 {strides = array<i32>} : memref<1x8x32xf32, #tpu.memory_space<vmem>>, vector<1x8x8xf32>,
    %60 = arith.truncf %56 : vector<8x8xf32> to vector<8x8xbf16>
    %cst_26 = arith.constant dense<0.000000e+00> : vector<8x8xf32>
    %61 = tpu.matmul %60, %42, %cst_26 {dimension_numbers = #tpu.dot_dimension_numbers<[1], [0], [0], [1], [0, 0, 1, 1], [], []>} : vector<8x8xbf16>, vector<8x8xbf16>, vector<8x8xf32> -> vector<8x8xf32>
    %c0_27 = arith.constant 0 : index
    %c8_28 = arith.constant 8 : index
    %62 = vector.load %arg14[%c0_27, %c8_28] : memref<8x32xf32, #tpu.memory_space<vmem>>, vector<8x8xf32>
    tpu.vector_store %arg14[%c0_27, %c8_28], %61 {strides = array<i32>} : memref<8x32xf32, #tpu.memory_space<vmem>>, vector<8x8xf32>,
    %63 = vector.extract_strided_slice %7 {offsets = [0, 16], sizes = [8, 8], strides = [1, 1]} : vector<8x32xf32> to vector<8x8xf32>
    %64 = arith.truncf %63 : vector<8x8xf32> to vector<8x8xbf16>
    %65 = vector.extract_strided_slice %10 {offsets = [0, 16], sizes = [8, 8], strides = [1, 1]} : vector<8x32xf32> to vector<8x8xf32>
    %66 = arith.truncf %65 : vector<8x8xf32> to vector<8x8xbf16>
    %67 = vector.extract_strided_slice %12 {offsets = [0, 16], sizes = [8, 8], strides = [1, 1]} : vector<8x32xbf16> to vector<8x8xbf16>
    %cst_29 = arith.constant dense<0.000000e+00> : vector<8x8xf32>
    %68 = tpu.matmul %64, %66, %cst_29 {dimension_numbers = #tpu.dot_dimension_numbers<[1], [1], [0], [0], [0, 0, 1, 0], [], []>} : vector<8x8xbf16>, vector<8x8xbf16>, vector<8x8xf32> -> vector<8x8xf32>
    %cst_30 = arith.constant 0.353553385 : f32
    %69 = vector.broadcast %cst_30 : f32 to vector<8x8xf32>
    %70 = arith.mulf %68, %69 : vector<8x8xf32>
    %71 = arith.addf %70, %3 : vector<8x8xf32>
    %cst_31 = arith.constant dense<0xFF800000> : vector<8xf32>
    %72 = vector.multi_reduction <maximumf>, %71, %cst_31 [1] : vector<8x8xf32> to vector<8xf32>
    %73 = vector.shape_cast %72 : vector<8xf32> to vector<8x1xf32>
    %74 = vector.broadcast %73 : vector<8x1xf32> to vector<8x8xf32>
    %75 = arith.subf %71, %74 : vector<8x8xf32>
    %76 = math.exp %75 : vector<8x8xf32>
    %cst_32 = arith.constant dense<0.000000e+00> : vector<8xf32>
    %77 = vector.multi_reduction <add>, %76, %cst_32 [1] : vector<8x8xf32> to vector<8xf32>
    %78 = vector.shape_cast %77 : vector<8xf32> to vector<8x1xf32>
    %79 = tpu.reciprocal %78 {approx = true} : vector<8x1xf32> -> vector<8x1xf32>
    %80 = vector.broadcast %79 : vector<8x1xf32> to vector<8x8xf32>
    %81 = arith.mulf %76, %80 : vector<8x8xf32>
    %c0_33 = arith.constant 0 : index
    %c0_34 = arith.constant 0 : index
    %c16 = arith.constant 16 : index
    %82 = vector.load %arg13[%c0_33, %c0_34, %c16] : memref<1x8x32xf32, #tpu.memory_space<vmem>>, vector<1x8x8xf32>
    %83 = vector.shape_cast %82 : vector<1x8x8xf32> to vector<8x8xf32>
    %84 = vector.shape_cast %81 : vector<8x8xf32> to vector<1x8x8xf32>
    tpu.vector_store %arg13[%c0_33, %c0_34, %c16], %84 {strides = array<i32>} : memref<1x8x32xf32, #tpu.memory_space<vmem>>, vector<1x8x8xf32>,
    %85 = arith.truncf %81 : vector<8x8xf32> to vector<8x8xbf16>
    %cst_35 = arith.constant dense<0.000000e+00> : vector<8x8xf32>
    %86 = tpu.matmul %85, %67, %cst_35 {dimension_numbers = #tpu.dot_dimension_numbers<[1], [0], [0], [1], [0, 0, 1, 1], [], []>} : vector<8x8xbf16>, vector<8x8xbf16>, vector<8x8xf32> -> vector<8x8xf32>
    %c0_36 = arith.constant 0 : index
    %c16_37 = arith.constant 16 : index
    %87 = vector.load %arg14[%c0_36, %c16_37] : memref<8x32xf32, #tpu.memory_space<vmem>>, vector<8x8xf32>
    tpu.vector_store %arg14[%c0_36, %c16_37], %86 {strides = array<i32>} : memref<8x32xf32, #tpu.memory_space<vmem>>, vector<8x8xf32>,
    %88 = vector.extract_strided_slice %7 {offsets = [0, 24], sizes = [8, 8], strides = [1, 1]} : vector<8x32xf32> to vector<8x8xf32>
    %89 = arith.truncf %88 : vector<8x8xf32> to vector<8x8xbf16>
    %90 = vector.extract_strided_slice %10 {offsets = [0, 24], sizes = [8, 8], strides = [1, 1]} : vector<8x32xf32> to vector<8x8xf32>
    %91 = arith.truncf %90 : vector<8x8xf32> to vector<8x8xbf16>
    %92 = vector.extract_strided_slice %12 {offsets = [0, 24], sizes = [8, 8], strides = [1, 1]} : vector<8x32xbf16> to vector<8x8xbf16>
    %cst_38 = arith.constant dense<0.000000e+00> : vector<8x8xf32>
    %93 = tpu.matmul %89, %91, %cst_38 {dimension_numbers = #tpu.dot_dimension_numbers<[1], [1], [0], [0], [0, 0, 1, 0], [], []>} : vector<8x8xbf16>, vector<8x8xbf16>, vector<8x8xf32> -> vector<8x8xf32>
    %cst_39 = arith.constant 0.353553385 : f32
    %94 = vector.broadcast %cst_39 : f32 to vector<8x8xf32>
    %95 = arith.mulf %93, %94 : vector<8x8xf32>
    %96 = arith.addf %95, %3 : vector<8x8xf32>
    %cst_40 = arith.constant dense<0xFF800000> : vector<8xf32>
    %97 = vector.multi_reduction <maximumf>, %96, %cst_40 [1] : vector<8x8xf32> to vector<8xf32>
    %98 = vector.shape_cast %97 : vector<8xf32> to vector<8x1xf32>
    %99 = vector.broadcast %98 : vector<8x1xf32> to vector<8x8xf32>
    %100 = arith.subf %96, %99 : vector<8x8xf32>
    %101 = math.exp %100 : vector<8x8xf32>
    %cst_41 = arith.constant dense<0.000000e+00> : vector<8xf32>
    %102 = vector.multi_reduction <add>, %101, %cst_41 [1] : vector<8x8xf32> to vector<8xf32>
    %103 = vector.shape_cast %102 : vector<8xf32> to vector<8x1xf32>
    %104 = tpu.reciprocal %103 {approx = true} : vector<8x1xf32> -> vector<8x1xf32>
    %105 = vector.broadcast %104 : vector<8x1xf32> to vector<8x8xf32>
    %106 = arith.mulf %101, %105 : vector<8x8xf32>
    %c0_42 = arith.constant 0 : index
    %c0_43 = arith.constant 0 : index
    %c24 = arith.constant 24 : index
    %107 = vector.load %arg13[%c0_42, %c0_43, %c24] : memref<1x8x32xf32, #tpu.memory_space<vmem>>, vector<1x8x8xf32>
    %108 = vector.shape_cast %107 : vector<1x8x8xf32> to vector<8x8xf32>
    %109 = vector.shape_cast %106 : vector<8x8xf32> to vector<1x8x8xf32>
    tpu.vector_store %arg13[%c0_42, %c0_43, %c24], %109 {strides = array<i32>} : memref<1x8x32xf32, #tpu.memory_space<vmem>>, vector<1x8x8xf32>,
    %110 = arith.truncf %106 : vector<8x8xf32> to vector<8x8xbf16>
    %cst_44 = arith.constant dense<0.000000e+00> : vector<8x8xf32>
    %111 = tpu.matmul %110, %92, %cst_44 {dimension_numbers = #tpu.dot_dimension_numbers<[1], [0], [0], [1], [0, 0, 1, 1], [], []>} : vector<8x8xbf16>, vector<8x8xbf16>, vector<8x8xf32> -> vector<8x8xf32>
    %c0_45 = arith.constant 0 : index
    %c24_46 = arith.constant 24 : index
    %112 = vector.load %arg14[%c0_45, %c24_46] : memref<8x32xf32, #tpu.memory_space<vmem>>, vector<8x8xf32>
    tpu.vector_store %arg14[%c0_45, %c24_46], %111 {strides = array<i32>} : memref<8x32xf32, #tpu.memory_space<vmem>>, vector<8x8xf32>,
    %c0_47 = arith.constant 0 : index
    %c0_48 = arith.constant 0 : index
    %113 = vector.load %arg14[%c0_47, %c0_48] : memref<8x32xf32, #tpu.memory_space<vmem>>, vector<8x32xf32>
    %114 = arith.truncf %113 : vector<8x32xf32> to vector<8x32xbf16>
    %c0_49 = arith.constant 0 : index
    %c0_50 = arith.constant 0 : index
    %115 = vector.load %arg5[%c0_49, %c0_50] : memref<32x32xbf16, #tpu.memory_space<vmem>>, vector<32x32xbf16>
    %cst_51 = arith.constant dense<0.000000e+00> : vector<8x32xf32>
    %116 = tpu.matmul %114, %115, %cst_51 {dimension_numbers = #tpu.dot_dimension_numbers<[1], [0], [0], [1], [0, 0, 1, 1], [], []>} : vector<8x32xbf16>, vector<32x32xbf16>, vector<8x32xf32> -> vector<8x32xf32>
    %117 = arith.addf %116, %1 : vector<8x32xf32>
    %c0_52 = arith.constant 0 : index
    %c0_53 = arith.constant 0 : index
    %118 = vector.load %arg6[%c0_52, %c0_53] : memref<1x32xf32, #tpu.memory_space<vmem>>, vector<1x32xf32>
    %c0_54 = arith.constant 0 : index
    %c0_55 = arith.constant 0 : index
    %119 = vector.load %arg7[%c0_54, %c0_55] : memref<1x32xf32, #tpu.memory_space<vmem>>, vector<1x32xf32>
    %cst_56 = arith.constant dense<0.000000e+00> : vector<8xf32>
    %120 = vector.multi_reduction <add>, %117, %cst_56 [1] : vector<8x32xf32> to vector<8xf32>
    %121 = vector.shape_cast %120 : vector<8xf32> to vector<8x1xf32>
    %cst_57 = arith.constant 3.125000e-02 : f32
    %122 = vector.broadcast %cst_57 : f32 to vector<8x1xf32>
    %123 = arith.mulf %121, %122 : vector<8x1xf32>
    %124 = arith.mulf %117, %117 : vector<8x32xf32>
    %cst_58 = arith.constant dense<0.000000e+00> : vector<8xf32>
    %125 = vector.multi_reduction <add>, %124, %cst_58 [1] : vector<8x32xf32> to vector<8xf32>
    %126 = vector.shape_cast %125 : vector<8xf32> to vector<8x1xf32>
    %cst_59 = arith.constant 3.125000e-02 : f32
    %127 = vector.broadcast %cst_59 : f32 to vector<8x1xf32>
    %128 = arith.mulf %126, %127 : vector<8x1xf32>
    %129 = arith.mulf %123, %123 : vector<8x1xf32>
    %130 = arith.subf %128, %129 : vector<8x1xf32>
    %131 = vector.broadcast %123 : vector<8x1xf32> to vector<8x32xf32>
    %132 = arith.subf %117, %131 : vector<8x32xf32>
    %cst_60 = arith.constant 9.99999974E-6 : f32
    %133 = vector.broadcast %cst_60 : f32 to vector<8x1xf32>
    %134 = arith.addf %130, %133 : vector<8x1xf32>
    %135 = math.rsqrt %134 : vector<8x1xf32>
    %136 = vector.broadcast %135 : vector<8x1xf32> to vector<8x32xf32>
    %137 = arith.mulf %132, %136 : vector<8x32xf32>
    %138 = vector.broadcast %118 : vector<1x32xf32> to vector<8x32xf32>
    %139 = arith.mulf %137, %138 : vector<8x32xf32>
    %140 = vector.broadcast %119 : vector<1x32xf32> to vector<8x32xf32>
    %141 = arith.addf %139, %140 : vector<8x32xf32>
    %142 = arith.truncf %141 : vector<8x32xf32> to vector<8x32xbf16>
    %c0_61 = arith.constant 0 : index
    %c0_62 = arith.constant 0 : index
    %143 = vector.load %arg8[%c0_61, %c0_62] : memref<32x64xbf16, #tpu.memory_space<vmem>>, vector<32x64xbf16>
    %cst_63 = arith.constant dense<0.000000e+00> : vector<8x64xf32>
    %144 = tpu.matmul %142, %143, %cst_63 {dimension_numbers = #tpu.dot_dimension_numbers<[1], [0], [0], [1], [0, 0, 1, 1], [], []>} : vector<8x32xbf16>, vector<32x64xbf16>, vector<8x64xf32> -> vector<8x64xf32>
    %cst_64 = arith.constant 0.000000e+00 : f32
    %145 = vector.broadcast %cst_64 : f32 to vector<8x64xf32>
    %146 = arith.maximumf %144, %145 : vector<8x64xf32>
    %147 = arith.truncf %146 : vector<8x64xf32> to vector<8x64xbf16>
    %c0_65 = arith.constant 0 : index
    %c0_66 = arith.constant 0 : index
    %148 = vector.load %arg9[%c0_65, %c0_66] : memref<64x32xbf16, #tpu.memory_space<vmem>>, vector<64x32xbf16>
    %cst_67 = arith.constant dense<0.000000e+00> : vector<8x32xf32>
    %149 = tpu.matmul %147, %148, %cst_67 {dimension_numbers = #tpu.dot_dimension_numbers<[1], [0], [0], [1], [0, 0, 1, 1], [], []>} : vector<8x64xbf16>, vector<64x32xbf16>, vector<8x32xf32> -> vector<8x32xf32>
    %150 = arith.addf %149, %141 : vector<8x32xf32>
    %c0_68 = arith.constant 0 : index
    %c0_69 = arith.constant 0 : index
    %151 = vector.load %arg10[%c0_68, %c0_69] : memref<1x32xf32, #tpu.memory_space<vmem>>, vector<1x32xf32>
    %c0_70 = arith.constant 0 : index
    %c0_71 = arith.constant 0 : index
    %152 = vector.load %arg11[%c0_70, %c0_71] : memref<1x32xf32, #tpu.memory_space<vmem>>, vector<1x32xf32>
    %cst_72 = arith.constant dense<0.000000e+00> : vector<8xf32>
    %153 = vector.multi_reduction <add>, %150, %cst_72 [1] : vector<8x32xf32> to vector<8xf32>
    %154 = vector.shape_cast %153 : vector<8xf32> to vector<8x1xf32>
    %cst_73 = arith.constant 3.125000e-02 : f32
    %155 = vector.broadcast %cst_73 : f32 to vector<8x1xf32>
    %156 = arith.mulf %154, %155 : vector<8x1xf32>
    %157 = arith.mulf %150, %150 : vector<8x32xf32>
    %cst_74 = arith.constant dense<0.000000e+00> : vector<8xf32>
    %158 = vector.multi_reduction <add>, %157, %cst_74 [1] : vector<8x32xf32> to vector<8xf32>
    %159 = vector.shape_cast %158 : vector<8xf32> to vector<8x1xf32>
    %cst_75 = arith.constant 3.125000e-02 : f32
    %160 = vector.broadcast %cst_75 : f32 to vector<8x1xf32>
    %161 = arith.mulf %159, %160 : vector<8x1xf32>
    %162 = arith.mulf %156, %156 : vector<8x1xf32>
    %163 = arith.subf %161, %162 : vector<8x1xf32>
    %164 = vector.broadcast %156 : vector<8x1xf32> to vector<8x32xf32>
    %165 = arith.subf %150, %164 : vector<8x32xf32>
    %cst_76 = arith.constant 9.99999974E-6 : f32
    %166 = vector.broadcast %cst_76 : f32 to vector<8x1xf32>
    %167 = arith.addf %163, %166 : vector<8x1xf32>
    %168 = math.rsqrt %167 : vector<8x1xf32>
    %169 = vector.broadcast %168 : vector<8x1xf32> to vector<8x32xf32>
    %170 = arith.mulf %165, %169 : vector<8x32xf32>
    %171 = vector.broadcast %151 : vector<1x32xf32> to vector<8x32xf32>
    %172 = arith.mulf %170, %171 : vector<8x32xf32>
    %173 = vector.broadcast %152 : vector<1x32xf32> to vector<8x32xf32>
    %174 = arith.addf %172, %173 : vector<8x32xf32>
    %c0_77 = arith.constant 0 : index
    %c0_78 = arith.constant 0 : index
    %c0_79 = arith.constant 0 : index
    %175 = vector.load %arg12[%c0_77, %c0_78, %c0_79] : memref<1x8x32xf32, #tpu.memory_space<vmem>>, vector<1x8x32xf32>
    %176 = vector.shape_cast %175 : vector<1x8x32xf32> to vector<8x32xf32>
    %177 = vector.shape_cast %174 : vector<8x32xf32> to vector<1x8x32xf32>
    tpu.vector_store %arg12[%c0_77, %c0_78, %c0_79], %177 {strides = array<i32>} : memref<1x8x32xf32, #tpu.memory_space<vmem>>, vector<1x8x32xf32>,
    return
  }
  func.func @transform_0(%arg0: i32) -> (i32, i32, i32) {
    %c0_i32 = arith.constant 0 : i32
    %c0_i32_0 = arith.constant 0 : i32
    %c0_i32_1 = arith.constant 0 : i32
    return %arg0, %c0_i32, %c0_i32_0 : i32, i32, i32
  }
  func.func @transform_1(%arg0: i32) -> (i32, i32, i32) {
    %c0_i32 = arith.constant 0 : i32
    %c0_i32_0 = arith.constant 0 : i32
    %c0_i32_1 = arith.constant 0 : i32
    return %arg0, %c0_i32, %c0_i32_0 : i32, i32, i32
  }
  func.func @transform_2(%arg0: i32) -> (i32, i32) {
    %c0_i32 = arith.constant 0 : i32
    %c0_i32_0 = arith.constant 0 : i32
    %c0_i32_1 = arith.constant 0 : i32
    return %c0_i32, %c0_i32_0 : i32, i32
  }
  func.func @transform_3(%arg0: i32) -> (i32, i32) {
    %c0_i32 = arith.constant 0 : i32
    %c0_i32_0 = arith.constant 0 : i32
    %c0_i32_1 = arith.constant 0 : i32
    return %c0_i32, %c0_i32_0 : i32, i32
  }
  func.func @transform_4(%arg0: i32) -> (i32, i32) {
    %c0_i32 = arith.constant 0 : i32
    %c0_i32_0 = arith.constant 0 : i32
    %c0_i32_1 = arith.constant 0 : i32
    return %c0_i32, %c0_i32_0 : i32, i32
  }
  func.func @transform_5(%arg0: i32) -> (i32, i32) {
    %c0_i32 = arith.constant 0 : i32
    %c0_i32_0 = arith.constant 0 : i32
    %c0_i32_1 = arith.constant 0 : i32
    return %c0_i32, %c0_i32_0 : i32, i32
  }
  func.func @transform_6(%arg0: i32) -> (i32, i32) {
    %c0_i32 = arith.constant 0 : i32
    %c0_i32_0 = arith.constant 0 : i32
    %c0_i32_1 = arith.constant 0 : i32
    return %c0_i32, %c0_i32_0 : i32, i32
  }
  func.func @transform_7(%arg0: i32) -> (i32, i32) {
    %c0_i32 = arith.constant 0 : i32
    %c0_i32_0 = arith.constant 0 : i32
    %c0_i32_1 = arith.constant 0 : i32
    return %c0_i32, %c0_i32_0 : i32, i32
  }
  func.func @transform_8(%arg0: i32) -> (i32, i32) {
    %c0_i32 = arith.constant 0 : i32
    %c0_i32_0 = arith.constant 0 : i32
    %c0_i32_1 = arith.constant 0 : i32
    return %c0_i32, %c0_i32_0 : i32, i32
  }
  func.func @transform_9(%arg0: i32) -> (i32, i32) {
    %c0_i32 = arith.constant 0 : i32
    %c0_i32_0 = arith.constant 0 : i32
    %c0_i32_1 = arith.constant 0 : i32
    return %c0_i32, %c0_i32_0 : i32, i32
  }
  func.func @transform_10(%arg0: i32) -> (i32, i32) {
    %c0_i32 = arith.constant 0 : i32
    %c0_i32_0 = arith.constant 0 : i32
    %c0_i32_1 = arith.constant 0 : i32
    return %c0_i32, %c0_i32_0 : i32, i32
  }
  func.func @transform_11(%arg0: i32) -> (i32, i32, i32) {
    %c0_i32 = arith.constant 0 : i32
    %c0_i32_0 = arith.constant 0 : i32
    %c0_i32_1 = arith.constant 0 : i32
    return %arg0, %c0_i32, %c0_i32_0 : i32, i32, i32
  }
  func.func @transform_12(%arg0: i32) -> (i32, i32, i32) {
    %c0_i32 = arith.constant 0 : i32
    %c0_i32_0 = arith.constant 0 : i32
    %c0_i32_1 = arith.constant 0 : i32
    return %arg0, %c0_i32, %c0_i32_0 : i32, i32, i32
  }
}

</mosaic_0001>

<llo_original>
// kernel: tpu_custom_call.1
$region0: #{tpu_custom_call.1}
  #allocation0 [shape = 'u32[]', space=smem, size = 0x4, offset = 0x4, fixed_abs, tag = 'smem constant byte address 0x4 - core index']
  #allocation1 [shape = 'u32[72,128]{1,0:T(1,128)}', space=vmem, size = 0x9000, scoped, tag = 'internal scratch']
  #allocation2 [shape = 'f32[8,32]{1,0:T(8,128)}', space=vmem, size = 0x1000, scoped, tag = 'scratch operand']
  %s0 = inlined_call_operand.vmem [shape: f32[2,8,32], index: 0, kind: input, shape index: {}]
  %s1 = inlined_call_operand.vmem [shape: f32[2,8,8], index: 1, kind: input, shape index: {}]
  %s2 = inlined_call_operand.vmem [shape: bf16[32,32], index: 2, kind: input, shape index: {}]
  %s3 = inlined_call_operand.hbm [shape: bf16[32,64], index: 3, kind: input, shape index: {}]
  %s4 = inlined_call_operand.hbm [shape: bf16[32,32], index: 4, kind: input, shape index: {}]
  %s5 = inlined_call_operand.vmem [shape: f32[1,32], index: 5, kind: input, shape index: {}]
  %s6 = inlined_call_operand.vmem [shape: f32[1,32], index: 6, kind: input, shape index: {}]
  %s7 = inlined_call_operand.hbm [shape: bf16[32,64], index: 7, kind: input, shape index: {}]
  %s8 = inlined_call_operand.vmem [shape: bf16[64,32], index: 8, kind: input, shape index: {}]
  %s9 = inlined_call_operand.vmem [shape: f32[1,32], index: 9, kind: input, shape index: {}]
  %s10 = inlined_call_operand.vmem [shape: f32[1,32], index: 10, kind: input, shape index: {}]
  %s11 = inlined_call_operand.hbm [shape: f32[2,8,32], index: 11, kind: output, shape index: {0}]
  %s12 = inlined_call_operand.hbm [shape: f32[2,8,32], index: 12, kind: output, shape index: {1}]
  %13 = xla_tuple %s11, %s12
  %s14 = sld [smem:[#allocation0]]
  $region97: #{tpu_custom_call.1} parent=0
    _
  %s16 = ssub.s32 1, %s14
  %s17 = scalar_select 0, %s16, %s14
  $region1: #{tpu_custom_call.1} parent=0
    #allocation3 [shape = 'u8[8192]{0}', space=vmem, size = 0x2000, scoped, tag = 'input window, operand 3, single buffered']
    #allocation4 [shape = 's32[2]{0}', space=sflag, size = 0x8, scoped, tag = 'scoped memory for tpu_custom_call.1']
    #allocation5 [shape = 's32[2]{0}', space=sflag, size = 0x8, scoped, tag = 'scoped memory for tpu_custom_call.1']
    #allocation6 [shape = 'u8[8192]{0}', space=vmem, size = 0x2000, scoped, tag = 'input window, operand 4, single buffered']
    #allocation7 [shape = 's32[1]{0}', space=sflag, size = 0x4, scoped, tag = 'scoped memory for tpu_custom_call.1']
    #allocation8 [shape = 'u8[8192]{0}', space=vmem, size = 0x2000, scoped, tag = 'input window, operand 7, single buffered']
    #allocation9 [shape = 'u8[8192]{0}', space=vmem, size = 0x2000, scoped, tag = 'output window, operand 0']
    #allocation10 [shape = 'u8[8192]{0}', space=vmem, size = 0x2000, scoped, tag = 'output window, operand 1']
    #allocation11 [shape = 's32[2]{0}', space=sflag, size = 0x8, scoped, tag = 'scoped memory for tpu_custom_call.1']
    %18 = vsyncpa [#allocation4], 0
    %19 = vsyncpa [#allocation7], 0
    %20 = vsyncpa [#allocation5], 0
    %s21 = scalar_lea.sflag [#allocation5], 1
    %22 = vsyncpa %s21, 0
    %23 = vsyncpa [#allocation11], 0
    %s24 = scalar_lea.sflag [#allocation11], 1
    %25 = vsyncpa %s24, 0
    loop: start=0, step=1, limit=4
    $region2: #{tpu_custom_call.1} parent=1 // loop_pre_header
      _
    $region3: #{tpu_custom_call.1} parent=1 // loop_header
      %s27 = sphi 0, %s31
      %p28 = scmp.ge.s32.totalorder %s27, 4
      %s37 = sphi 0, %s39
      %s40 = sphi 0, %s37
      %s41 = sphi 0, %s40
      %s57 = sphi 0, %s41
      %s63 = sphi 0, %s65
      %s66 = sphi 0, %s63
      %s67 = sphi 0, %s66
      %s83 = sphi 0, %s67
      %s87 = sphi 0, %s87
      %s89 = sphi 0, %s87
      %s90 = sphi 0, %s89
      %s104 = sphi 0, %s90
      %s108 = sphi 0, %s108
      %s110 = sphi 0, %s108
      %s111 = sphi 0, %s110
      %s125 = sphi 0, %s111
      %s129 = sphi 0, %s129
      %s131 = sphi 0, %s129
      %s132 = sphi 0, %s131
      %s146 = sphi 0, %s132
      %s150 = sphi 0, %s150
      %s152 = sphi 0, %s150
      %s153 = sphi 0, %s152
      %s167 = sphi 0, %s153
      %s171 = sphi 0, %s171
      %s173 = sphi 0, %s171
      %s174 = sphi 0, %s173
      %s188 = sphi 0, %s174
      %s192 = sphi 0, %s192
      %s194 = sphi 0, %s192
      %s195 = sphi 0, %s194
      %s209 = sphi 0, %s195
      %s213 = sphi 0, %s213
      %s215 = sphi 0, %s213
      %s216 = sphi 0, %s215
      %s230 = sphi 0, %s216
      %s234 = sphi 0, %s234
      %s236 = sphi 0, %s234
      %s237 = sphi 0, %s236
      %s251 = sphi 0, %s237
      %s255 = sphi 0, %s255
      %s257 = sphi 0, %s255
      %s258 = sphi 0, %s257
      %s272 = sphi 0, %s258
      %s278 = sphi 0, %s280
      %s281 = sphi 0, %s278
      %s282 = sphi 0, %s281
      %s298 = sphi 0, %s282
      %s304 = sphi 0, %s306
      %s307 = sphi 0, %s304
      %s308 = sphi 0, %s307
      %s324 = sphi 0, %s308
    $region4: #{tpu_custom_call.1} parent=1 // loop_header_branch
      %30 = sbr.rel (%p28) target = $region8
    $region5: #{tpu_custom_call.1} parent=1 // loop_body
      %s32 = ssub.s32 %s27, 1
      %s33 = ssub.s32 %s27, 2
      %s34 = sadd.s32 %s27, 1
      %s35 = ssub.s32 %s27, %s34
      %p36 = scmp.eq.s32.totalorder %s35, 0
      %s38 = sadd.s32 %s37, 1
      %s39 = scalar_select %p36, %s37, %s38
      %p42 = pneg %p36
      %p43 = scmp.eq.s32.totalorder %s27, 1
      %p44 = por %p42, %p43
      %p45 = scmp.ne.s32.totalorder %s37, %s40
      %p46 = scmp.eq.s32.totalorder %s27, 0
      %p47 = por %p45, %p46
      %p48 = scmp.ne.s32.totalorder %s37, %s40
      %p49 = scmp.eq.s32.totalorder %s32, 1
      %p50 = por %p48, %p49
      %p51 = scmp.ne.s32.totalorder %s40, %s41
      %p52 = scmp.eq.s32.totalorder %s32, 0
      %p53 = por %p51, %p52
      %p54 = scmp.ne.s32.totalorder %s40, %s41
      %p55 = scmp.eq.s32.totalorder %s33, 1
      %p56 = por %p54, %p55
      %p58 = scmp.ne.s32.totalorder %s41, %s57
      %p59 = scmp.eq.s32.totalorder %s33, 0
      %p60 = por %p58, %p59
      %s61 = ssub.s32 %s27, %s34
      %p62 = scmp.eq.s32.totalorder %s61, 0
      %s64 = sadd.s32 %s63, 1
      %s65 = scalar_select %p62, %s63, %s64
      %p68 = pneg %p62
      %p69 = scmp.eq.s32.totalorder %s27, 1
      %p70 = por %p68, %p69
      %p71 = scmp.ne.s32.totalorder %s63, %s66
      %p72 = scmp.eq.s32.totalorder %s27, 0
      %p73 = por %p71, %p72
      %p74 = scmp.ne.s32.totalorder %s63, %s66
      %p75 = scmp.eq.s32.totalorder %s32, 1
      %p76 = por %p74, %p75
      %p77 = scmp.ne.s32.totalorder %s66, %s67
      %p78 = scmp.eq.s32.totalorder %s32, 0
      %p79 = por %p77, %p78
      %p80 = scmp.ne.s32.totalorder %s66, %s67
      %p81 = scmp.eq.s32.totalorder %s33, 1
      %p82 = por %p80, %p81
      %p84 = scmp.ne.s32.totalorder %s67, %s83
      %p85 = scmp.eq.s32.totalorder %s33, 0
      %p86 = por %p84, %p85
      %s88 = sadd.s32 %s87, 1
      %p91 = scmp.eq.s32.totalorder %s27, 1
      %p92 = scmp.ne.s32.totalorder %s87, %s89
      %p93 = scmp.eq.s32.totalorder %s27, 0
      %p94 = por %p92, %p93
      %p95 = scmp.ne.s32.totalorder %s87, %s89
      %p96 = scmp.eq.s32.totalorder %s32, 1
      %p97 = por %p95, %p96
      %p98 = scmp.ne.s32.totalorder %s89, %s90
      %p99 = scmp.eq.s32.totalorder %s32, 0
      %p100 = por %p98, %p99
      %p101 = scmp.ne.s32.totalorder %s89, %s90
      %p102 = scmp.eq.s32.totalorder %s33, 1
      %p103 = por %p101, %p102
      %p105 = scmp.ne.s32.totalorder %s90, %s104
      %p106 = scmp.eq.s32.totalorder %s33, 0
      %p107 = por %p105, %p106
      %s109 = sadd.s32 %s108, 1
      %p112 = scmp.eq.s32.totalorder %s27, 1
      %p113 = scmp.ne.s32.totalorder %s108, %s110
      %p114 = scmp.eq.s32.totalorder %s27, 0
      %p115 = por %p113, %p114
      %p116 = scmp.ne.s32.totalorder %s108, %s110
      %p117 = scmp.eq.s32.totalorder %s32, 1
      %p118 = por %p116, %p117
      %p119 = scmp.ne.s32.totalorder %s110, %s111
      %p120 = scmp.eq.s32.totalorder %s32, 0
      %p121 = por %p119, %p120
      %p122 = scmp.ne.s32.totalorder %s110, %s111
      %p123 = scmp.eq.s32.totalorder %s33, 1
      %p124 = por %p122, %p123
      %p126 = scmp.ne.s32.totalorder %s111, %s125
      %p127 = scmp.eq.s32.totalorder %s33, 0
      %p128 = por %p126, %p127
      %s130 = sadd.s32 %s129, 1
      %p133 = scmp.eq.s32.totalorder %s27, 1
      %p134 = scmp.ne.s32.totalorder %s129, %s131
      %p135 = scmp.eq.s32.totalorder %s27, 0
      %p136 = por %p134, %p135
      %p137 = scmp.ne.s32.totalorder %s129, %s131
      %p138 = scmp.eq.s32.totalorder %s32, 1
      %p139 = por %p137, %p138
      %p140 = scmp.ne.s32.totalorder %s131, %s132
      %p141 = scmp.eq.s32.totalorder %s32, 0
      %p142 = por %p140, %p141
      %p143 = scmp.ne.s32.totalorder %s131, %s132
      %p144 = scmp.eq.s32.totalorder %s33, 1
      %p145 = por %p143, %p144
      %p147 = scmp.ne.s32.totalorder %s132, %s146
      %p148 = scmp.eq.s32.totalorder %s33, 0
      %p149 = por %p147, %p148
      %s151 = sadd.s32 %s150, 1
      %p154 = scmp.eq.s32.totalorder %s27, 1
      %p155 = scmp.ne.s32.totalorder %s150, %s152
      %p156 = scmp.eq.s32.totalorder %s27, 0
      %p157 = por %p155, %p156
      %p158 = scmp.ne.s32.totalorder %s150, %s152
      %p159 = scmp.eq.s32.totalorder %s32, 1
      %p160 = por %p158, %p159
      %p161 = scmp.ne.s32.totalorder %s152, %s153
      %p162 = scmp.eq.s32.totalorder %s32, 0
      %p163 = por %p161, %p162
      %p164 = scmp.ne.s32.totalorder %s152, %s153
      %p165 = scmp.eq.s32.totalorder %s33, 1
      %p166 = por %p164, %p165
      %p168 = scmp.ne.s32.totalorder %s153, %s167
      %p169 = scmp.eq.s32.totalorder %s33, 0
      %p170 = por %p168, %p169
      %s172 = sadd.s32 %s171, 1
      %p175 = scmp.eq.s32.totalorder %s27, 1
      %p176 = scmp.ne.s32.totalorder %s171, %s173
      %p177 = scmp.eq.s32.totalorder %s27, 0
      %p178 = por %p176, %p177
      %p179 = scmp.ne.s32.totalorder %s171, %s173
      %p180 = scmp.eq.s32.totalorder %s32, 1
      %p181 = por %p179, %p180
      %p182 = scmp.ne.s32.totalorder %s173, %s174
      %p183 = scmp.eq.s32.totalorder %s32, 0
      %p184 = por %p182, %p183
      %p185 = scmp.ne.s32.totalorder %s173, %s174
      %p186 = scmp.eq.s32.totalorder %s33, 1
      %p187 = por %p185, %p186
      %p189 = scmp.ne.s32.totalorder %s174, %s188
      %p190 = scmp.eq.s32.totalorder %s33, 0
      %p191 = por %p189, %p190
      %s193 = sadd.s32 %s192, 1
      %p196 = scmp.eq.s32.totalorder %s27, 1
      %p197 = scmp.ne.s32.totalorder %s192, %s194
      %p198 = scmp.eq.s32.totalorder %s27, 0
      %p199 = por %p197, %p198
      %p200 = scmp.ne.s32.totalorder %s192, %s194
      %p201 = scmp.eq.s32.totalorder %s32, 1
      %p202 = por %p200, %p201
      %p203 = scmp.ne.s32.totalorder %s194, %s195
      %p204 = scmp.eq.s32.totalorder %s32, 0
      %p205 = por %p203, %p204
      %p206 = scmp.ne.s32.totalorder %s194, %s195
      %p207 = scmp.eq.s32.totalorder %s33, 1
      %p208 = por %p206, %p207
      %p210 = scmp.ne.s32.totalorder %s195, %s209
      %p211 = scmp.eq.s32.totalorder %s33, 0
      %p212 = por %p210, %p211
      %s214 = sadd.s32 %s213, 1
      %p217 = scmp.eq.s32.totalorder %s27, 1
      %p218 = scmp.ne.s32.totalorder %s213, %s215
      %p219 = scmp.eq.s32.totalorder %s27, 0
      %p220 = por %p218, %p219
      %p221 = scmp.ne.s32.totalorder %s213, %s215
      %p222 = scmp.eq.s32.totalorder %s32, 1
      %p223 = por %p221, %p222
      %p224 = scmp.ne.s32.totalorder %s215, %s216
      %p225 = scmp.eq.s32.totalorder %s32, 0
      %p226 = por %p224, %p225
      %p227 = scmp.ne.s32.totalorder %s215, %s216
      %p228 = scmp.eq.s32.totalorder %s33, 1
      %p229 = por %p227, %p228
      %p231 = scmp.ne.s32.totalorder %s216, %s230
      %p232 = scmp.eq.s32.totalorder %s33, 0
      %p233 = por %p231, %p232
      %s235 = sadd.s32 %s234, 1
      %p238 = scmp.eq.s32.totalorder %s27, 1
      %p239 = scmp.ne.s32.totalorder %s234, %s236
      %p240 = scmp.eq.s32.totalorder %s27, 0
      %p241 = por %p239, %p240
      %p242 = scmp.ne.s32.totalorder %s234, %s236
      %p243 = scmp.eq.s32.totalorder %s32, 1
      %p244 = por %p242, %p243
      %p245 = scmp.ne.s32.totalorder %s236, %s237
      %p246 = scmp.eq.s32.totalorder %s32, 0
      %p247 = por %p245, %p246
      %p248 = scmp.ne.s32.totalorder %s236, %s237
      %p249 = scmp.eq.s32.totalorder %s33, 1
      %p250 = por %p248, %p249
      %p252 = scmp.ne.s32.totalorder %s237, %s251
      %p253 = scmp.eq.s32.totalorder %s33, 0
      %p254 = por %p252, %p253
      %s256 = sadd.s32 %s255, 1
      %p259 = scmp.eq.s32.totalorder %s27, 1
      %p260 = scmp.ne.s32.totalorder %s255, %s257
      %p261 = scmp.eq.s32.totalorder %s27, 0
      %p262 = por %p260, %p261
      %p263 = scmp.ne.s32.totalorder %s255, %s257
      %p264 = scmp.eq.s32.totalorder %s32, 1
      %p265 = por %p263, %p264
      %p266 = scmp.ne.s32.totalorder %s257, %s258
      %p267 = scmp.eq.s32.totalorder %s32, 0
      %p268 = por %p266, %p267
      %p269 = scmp.ne.s32.totalorder %s257, %s258
      %p270 = scmp.eq.s32.totalorder %s33, 1
      %p271 = por %p269, %p270
      %p273 = scmp.ne.s32.totalorder %s258, %s272
      %p274 = scmp.eq.s32.totalorder %s33, 0
      %p275 = por %p273, %p274
      %s276 = ssub.s32 %s27, %s34
      %p277 = scmp.eq.s32.totalorder %s276, 0
      %s279 = sadd.s32 %s278, 1
      %s280 = scalar_select %p277, %s278, %s279
      %p283 = pneg %p277
      %p284 = scmp.eq.s32.totalorder %s27, 1
      %p285 = por %p283, %p284
      %p286 = scmp.ne.s32.totalorder %s278, %s281
      %p287 = scmp.eq.s32.totalorder %s27, 0
      %p288 = por %p286, %p287
      %p289 = scmp.ne.s32.totalorder %s278, %s281
      %p290 = scmp.eq.s32.totalorder %s32, 1
      %p291 = por %p289, %p290
      %p292 = scmp.ne.s32.totalorder %s281, %s282
      %p293 = scmp.eq.s32.totalorder %s32, 0
      %p294 = por %p292, %p293
      %p295 = scmp.ne.s32.totalorder %s281, %s282
      %p296 = scmp.eq.s32.totalorder %s33, 1
      %p297 = por %p295, %p296
      %p299 = scmp.ne.s32.totalorder %s282, %s298
      %p300 = scmp.eq.s32.totalorder %s33, 0
      %p301 = por %p299, %p300
      %s302 = ssub.s32 %s27, %s34
      %p303 = scmp.eq.s32.totalorder %s302, 0
      %s305 = sadd.s32 %s304, 1
      %s306 = scalar_select %p303, %s304, %s305
      %p309 = pneg %p303
      %p310 = scmp.eq.s32.totalorder %s27, 1
      %p311 = por %p309, %p310
      %p312 = scmp.ne.s32.totalorder %s304, %s307
      %p313 = scmp.eq.s32.totalorder %s27, 0
      %p314 = por %p312, %p313
      %p315 = scmp.ne.s32.totalorder %s304, %s307
      %p316 = scmp.eq.s32.totalorder %s32, 1
      %p317 = por %p315, %p316
      %p318 = scmp.ne.s32.totalorder %s307, %s308
      %p319 = scmp.eq.s32.totalorder %s32, 0
      %p320 = por %p318, %p319
      %p321 = scmp.ne.s32.totalorder %s307, %s308
      %p322 = scmp.eq.s32.totalorder %s33, 1
      %p323 = por %p321, %p322
      %p325 = scmp.ne.s32.totalorder %s308, %s324
      %p326 = scmp.eq.s32.totalorder %s33, 0
      %p327 = por %p325, %p326
      %p328 = scmp.le.s32.totalorder 1, %s27
      %p329 = scmp.lt.s32.totalorder %s27, 3
      %p330 = pnand %p328, %p329
      %p331 = pneg %p330
      // Predicated region
      $region9: #{tpu_custom_call.1} parent=5 // pred_check
        _
      $region10: #{tpu_custom_call.1} parent=5 // pred_check_branch
        %333 = sbr.rel (%p330) target = $region12
      $region11: #{tpu_custom_call.1} parent=5 // pred_region
        %s334 = ssub.s32 %s27, 1
        // Predicated region
        $region13: #{tpu_custom_call.1} parent=11 // pred_check
          %p335 = pneg %p100
        $region14: #{tpu_custom_call.1} parent=11 // pred_check_branch
          %337 = sbr.rel (%p335) target = $region16
        $region15: #{tpu_custom_call.1} parent=11 // pred_region
          _
        $region16: #{tpu_custom_call.1} parent=11 // pred_fallthru
          _
        // Predicated region
        $region17: #{tpu_custom_call.1} parent=11 // pred_check
          %p338 = pneg %p121
        $region18: #{tpu_custom_call.1} parent=11 // pred_check_branch
          %340 = sbr.rel (%p338) target = $region20
        $region19: #{tpu_custom_call.1} parent=11 // pred_region
          %342 = vsyncadd [#allocation4], 0
          %s343 = sshll.u32 %s3, 4
          %s344 = int_to_ptr.hbm [resolvable:$true] %s343
          %s345 = sshll.u32 [#allocation3], 4
          %s346 = int_to_ptr.vmem [resolvable:$true] %s345
          %351 = dma.hbm_to_vmem [thread:$0]  %s344, 256, %s346, [#allocation4], 64, 64, 4
        $region20: #{tpu_custom_call.1} parent=11 // pred_fallthru
          _
        // Predicated region
        $region21: #{tpu_custom_call.1} parent=11 // pred_check
          %p352 = pneg %p142
        $region22: #{tpu_custom_call.1} parent=11 // pred_check_branch
          %354 = sbr.rel (%p352) target = $region24
        $region23: #{tpu_custom_call.1} parent=11 // pred_region
          %356 = vsyncadd [#allocation7], 0
          %s357 = sshll.u32 %s4, 4
          %s358 = int_to_ptr.hbm [resolvable:$true] %s357
          %s359 = sshll.u32 [#allocation6], 4
          %s360 = int_to_ptr.vmem [resolvable:$true] %s359
          %365 = dma.hbm_to_vmem [thread:$0]  %s358, 256, %s360, [#allocation7], 64, 64, 4
        $region24: #{tpu_custom_call.1} parent=11 // pred_fallthru
          _
        // Predicated region
        $region25: #{tpu_custom_call.1} parent=11 // pred_check
          %p366 = pneg %p163
        $region26: #{tpu_custom_call.1} parent=11 // pred_check_branch
          %368 = sbr.rel (%p366) target = $region28
        $region27: #{tpu_custom_call.1} parent=11 // pred_region
          _
        $region28: #{tpu_custom_call.1} parent=11 // pred_fallthru
          _
        // Predicated region
        $region29: #{tpu_custom_call.1} parent=11 // pred_check
          %p369 = pneg %p184
        $region30: #{tpu_custom_call.1} parent=11 // pred_check_branch
          %371 = sbr.rel (%p369) target = $region32
        $region31: #{tpu_custom_call.1} parent=11 // pred_region
          _
        $region32: #{tpu_custom_call.1} parent=11 // pred_fallthru
          _
        // Predicated region
        $region33: #{tpu_custom_call.1} parent=11 // pred_check
          %p372 = pneg %p205
        $region34: #{tpu_custom_call.1} parent=11 // pred_check_branch
          %374 = sbr.rel (%p372) target = $region36
        $region35: #{tpu_custom_call.1} parent=11 // pred_region
          %376 = vsyncadd [#allocation7], 0
          %s377 = sshll.u32 %s7, 4
          %s378 = int_to_ptr.hbm [resolvable:$true] %s377
          %s379 = sshll.u32 [#allocation8], 4
          %s380 = int_to_ptr.vmem [resolvable:$true] %s379
          %385 = dma.hbm_to_vmem [thread:$0]  %s378, 256, %s380, [#allocation7], 64, 64, 4
        $region36: #{tpu_custom_call.1} parent=11 // pred_fallthru
          _
        // Predicated region
        $region37: #{tpu_custom_call.1} parent=11 // pred_check
          %p386 = pneg %p226
        $region38: #{tpu_custom_call.1} parent=11 // pred_check_branch
          %388 = sbr.rel (%p386) target = $region40
        $region39: #{tpu_custom_call.1} parent=11 // pred_region
          _
        $region40: #{tpu_custom_call.1} parent=11 // pred_fallthru
          _
        // Predicated region
        $region41: #{tpu_custom_call.1} parent=11 // pred_check
          %p389 = pneg %p247
        $region42: #{tpu_custom_call.1} parent=11 // pred_check_branch
          %391 = sbr.rel (%p389) target = $region44
        $region43: #{tpu_custom_call.1} parent=11 // pred_region
          _
        $region44: #{tpu_custom_call.1} parent=11 // pred_fallthru
          _
        // Predicated region
        $region45: #{tpu_custom_call.1} parent=11 // pred_check
          %p392 = pneg %p268
        $region46: #{tpu_custom_call.1} parent=11 // pred_check_branch
          %394 = sbr.rel (%p392) target = $region48
        $region47: #{tpu_custom_call.1} parent=11 // pred_region
          _
        $region48: #{tpu_custom_call.1} parent=11 // pred_fallthru
          _
      $region12: #{tpu_custom_call.1} parent=5 // pred_fallthru
        _
      %p395 = scmp.lt.s32.totalorder %s27, 2
      // Predicated region
      $region49: #{tpu_custom_call.1} parent=5 // pred_check
        %p396 = pneg %p395
      $region50: #{tpu_custom_call.1} parent=5 // pred_check_branch
        %398 = sbr.rel (%p396) target = $region52
      $region51: #{tpu_custom_call.1} parent=5 // pred_region
        // Predicated region
        $region53: #{tpu_custom_call.1} parent=51 // pred_check
          %p399 = pneg %p47
        $region54: #{tpu_custom_call.1} parent=51 // pred_check_branch
          %401 = sbr.rel (%p399) target = $region56
        $region55: #{tpu_custom_call.1} parent=51 // pred_region
          %p402 = scmp.lt.s32.totalorder %s27, 1
          %s403 = scalar_select %p402, %s27, 1
          %s404 = smul.addr %s403, 8
          %s405 = scalar_lea.vmem %s0, %s404
        $region56: #{tpu_custom_call.1} parent=51 // pred_fallthru
          _
        // Predicated region
        $region57: #{tpu_custom_call.1} parent=51 // pred_check
          %p406 = pneg %p73
        $region58: #{tpu_custom_call.1} parent=51 // pred_check_branch
          %408 = sbr.rel (%p406) target = $region60
        $region59: #{tpu_custom_call.1} parent=51 // pred_region
          %p409 = scmp.lt.s32.totalorder %s27, 1
          %s410 = scalar_select %p409, %s27, 1
          %s411 = smul.addr %s410, 8
          %s412 = scalar_lea.vmem %s1, %s411
        $region60: #{tpu_custom_call.1} parent=51 // pred_fallthru
          _
      $region52: #{tpu_custom_call.1} parent=5 // pred_fallthru
        _
      %p413 = scmp.le.s32.totalorder 1, %s27
      %p414 = scmp.lt.s32.totalorder %s27, 3
      %p415 = pnand %p413, %p414
      %p416 = pneg %p415
      // Predicated region
      $region61: #{tpu_custom_call.1} parent=5 // pred_check
        _
      $region62: #{tpu_custom_call.1} parent=5 // pred_check_branch
        %418 = sbr.rel (%p415) target = $region64
      $region63: #{tpu_custom_call.1} parent=5 // pred_region
        %s419 = ssub.s32 %s27, 1
        // Predicated region
        $region65: #{tpu_custom_call.1} parent=63 // pred_check
          %p420 = pneg %p121
        $region66: #{tpu_custom_call.1} parent=63 // pred_check_branch
          %422 = sbr.rel (%p420) target = $region68
        $region67: #{tpu_custom_call.1} parent=63 // pred_region
          %424 = dma.done [#allocation4], 256
        $region68: #{tpu_custom_call.1} parent=63 // pred_fallthru
          _
        // Predicated region
        $region69: #{tpu_custom_call.1} parent=63 // pred_check
          %p425 = pneg %p142
        $region70: #{tpu_custom_call.1} parent=63 // pred_check_branch
          %427 = sbr.rel (%p425) target = $region72
        $region71: #{tpu_custom_call.1} parent=63 // pred_region
          %429 = dma.done [#allocation7], 256
        $region72: #{tpu_custom_call.1} parent=63 // pred_fallthru
          _
        // Predicated region
        $region73: #{tpu_custom_call.1} parent=63 // pred_check
          %p430 = pneg %p205
        $region74: #{tpu_custom_call.1} parent=63 // pred_check_branch
          %432 = sbr.rel (%p430) target = $region76
        $region75: #{tpu_custom_call.1} parent=63 // pred_region
          %434 = dma.done [#allocation7], 256
        $region76: #{tpu_custom_call.1} parent=63 // pred_fallthru
          _
        %p435 = scmp.lt.s32.totalorder %s32, 1
        %s436 = scalar_select %p435, %s32, 1
        %s437 = smul.addr %s436, 8
        %s438 = scalar_lea.vmem %s0, %s437
        %p439 = pneg %p53
        %p440 = pneg %p50
        %p441 = scmp.lt.s32.totalorder %s32, 1
        %s442 = scalar_select %p441, %s32, 1
        %s443 = smul.addr %s442, 8
        %s444 = scalar_lea.vmem %s1, %s443
        %p445 = pneg %p79
        %p446 = pneg %p76
        %p447 = pneg %p100
        %p448 = pneg %p97
        %p449 = pneg %p121
        %p450 = pneg %p118
        %p451 = pneg %p142
        %p452 = pneg %p139
        %p453 = pneg %p163
        %p454 = pneg %p160
        %p455 = pneg %p184
        %p456 = pneg %p181
        %p457 = pneg %p205
        %p458 = pneg %p202
        %p459 = pneg %p226
        %p460 = pneg %p223
        %p461 = pneg %p247
        %p462 = pneg %p244
        %p463 = pneg %p268
        %p464 = pneg %p265
        %p465 = pneg %p294
        %p466 = pneg %p291
        %s467 = sand.u32 %s281, 1
        %s468 = scalar_lea.sflag [#allocation5], %s467
        %s469 = sand.u32 %s281, 1
        %s470 = smul.addr %s469, 8
        %s471 = scalar_lea.vmem [#allocation9], %s470
        %p472 = pneg %p320
        %p473 = pneg %p317
        %s474 = sand.u32 %s307, 1
        %s475 = scalar_lea.sflag [#allocation11], %s474
        %s476 = sand.u32 %s307, 1
        %s477 = smul.addr %s476, 8
        %s478 = scalar_lea.vmem [#allocation10], %s477
        %p479 = scmp.lt.s32.totalorder %s32, 1
        %s480 = scalar_select %p479, %s32, 1
        %s481 = smul.addr %s480, 8
        %s482 = scalar_lea.vmem %s0, %s481
        %p483 = scmp.lt.s32.totalorder %s32, 1
        %s484 = scalar_select %p483, %s32, 1
        %s485 = smul.addr %s484, 8
        %s486 = scalar_lea.vmem %s1, %s485
        %v488 = vld [vmem:[%s482] sm:$0xff]
        %v489 = vld [vmem:[%s486] sm:$0xff]
        %v490 = vpack.c.bf16 %v488, %v488
        %v491 = vld [vmem:[%s2] sm:$0xf]
        %v492 = vld [vmem:[%s2 + $0x4] sm:$0xf]
        %v493 = vld [vmem:[%s2 + $0x8] sm:$0xf]
        %v494 = vld [vmem:[%s2 + $0xc] sm:$0xf]
        %v499 = vunpack.c.l.b16 %v491
        %v500 = vunpack.c.l.b16 %v492
        %v501 = vunpack.c.l.b16 %v493
        %v502 = vunpack.c.l.b16 %v494
        %v503 = vpack.c.b16 %v500, %v499
        %v504 = vpack.c.b16 %v502, %v501
        %vm507 = vcmask 261120
        %v509 = vsel %vm507, %v490, 0
        %511 = vmatpush.bf16.msra.mxu0 0
        %512 = vmatpush.bf16.msra.mxu0 0
        %513 = vmatpush.bf16.msra.mxu0 0
        %514 = vmatpush.bf16.msra.mxu0 0
        %515 = vmatpush.bf16.msra.mxu0 0
        %516 = vmatpush.bf16.msra.mxu0 0
        %517 = vmatpush.bf16.msra.mxu0 %v504
        %518 = vmatpush.bf16.msra.mxu0 %v503
        %519 = vmatmul.bf16.gmra.mxu0 %v509
        %v520 = vpop.f32.mrf.mxu0
        %v521 = vadd.f32 0.0, %v520
        %v522 = vpop.f32.mrf.mxu0
        %523 = vdwg.mxu0
        %v524 = vld [vmem:[#allocation3] sm:$0xf]
        %v525 = vld [vmem:[#allocation3 + $0x4] sm:$0xf]
        %v526 = vld [vmem:[#allocation3 + $0x8] sm:$0xf]
        %v527 = vld [vmem:[#allocation3 + $0xc] sm:$0xf]
        %v532 = vunpack.c.l.b16 %v524
        %v533 = vunpack.c.l.b16 %v525
        %v534 = vunpack.c.l.b16 %v526
        %v535 = vunpack.c.l.b16 %v527
        %v536 = vpack.c.b16 %v533, %v532
        %v537 = vpack.c.b16 %v535, %v534
        %540 = vmatpush.bf16.msra.mxu0 0
        %541 = vmatpush.bf16.msra.mxu0 0
        %542 = vmatpush.bf16.msra.mxu0 0
        %543 = vmatpush.bf16.msra.mxu0 0
        %544 = vmatpush.bf16.msra.mxu0 0
        %545 = vmatpush.bf16.msra.mxu0 0
        %546 = vmatpush.bf16.msra.mxu0 %v537
        %547 = vmatpush.bf16.msra.mxu0 %v536
        %548 = vmatmul.bf16.gmra.mxu0 %v509
        %v549 = vpop.f32.mrf.mxu0
        %v550 = vadd.f32 0.0, %v549
        %v551 = vpop.f32.mrf.mxu0
        %552 = vdwg.mxu0
        %v553 = vpack.c.bf16 %v550, %v550
        %v554 = vpack.c.bf16 %v521, %v521
        %vm555 = vcmask 64512
        %v557 = vsel %vm555, %v554, 0
        %v560 = vsel %vm555, %v553, 0
        %562 = vmatpush.bf16.xpose.msra.mxu0 0
        %563 = vmatpush.bf16.xpose.msra.mxu0 0
        %564 = vmatpush.bf16.xpose.msra.mxu0 0
        %565 = vmatpush.bf16.xpose.msra.mxu0 0
        %566 = vmatpush.bf16.xpose.msra.mxu0 0
        %567 = vmatpush.bf16.xpose.msra.mxu0 0
        %568 = vmatpush.bf16.xpose.msra.mxu0 0
        %569 = vmatpush.bf16.xpose.msra.mxu0 %v560
        %570 = vmatmul.bf16.gmra.mxu0 %v557
        %v571 = vpop.f32.mrf.mxu0
        %v572 = vadd.f32 0.0, %v571
        %v573 = vpop.f32.mrf.mxu0
        %574 = vdwg.mxu0
        %v575 = vmul.f32 %v572, 0.35355338
        %v576 = vadd.f32 %v575, %v489
        %v577 = vsel %vm555, %v576, -inf
        %578 = vmax.xlane.f32.xlu0 %v577
        %v579 = vpop.xlane.xlu0 %578
        %v580 = vsub.f32 %v576, %v579
        %v581 = vmul.f32 %v580, 1.442695
        %v582 = vpow.pop %v581
        %v583 = vsel %vm555, %v582, 0.0
        %584 = vadd.xlane.f32.xlu0 %v583
        %v585 = vpop.xlane.xlu0 %584
        %v586 = vrcp.pop %v585
        %v587 = vmul.f32 %v582, %v586
        %588 = vst.msk [vmem:[%s478] sm:$0xff] %vm555, %v587
        %v589 = vpack.c.bf16 %v587, %v587
        %v591 = vunpack.c.l.b16 %v553
        %v592 = vpack.c.b16 %v591, %v591
        %593 = vrot.lane.b32.xlu0 %v592, 96
        %v594 = vpop.permute.xlu0 %593
        %v596 = vsel %vm555, %v589, 0
        %vm598 = vcmask 1043456
        %v600 = vsel %vm598, %v594, 0
        %602 = vmatpush.bf16.msra.mxu0 0
        %603 = vmatpush.bf16.msra.mxu0 0
        %604 = vmatpush.bf16.msra.mxu0 0
        %605 = vmatpush.bf16.msra.mxu0 0
        %606 = vmatpush.bf16.msra.mxu0 0
        %607 = vmatpush.bf16.msra.mxu0 0
        %608 = vmatpush.bf16.msra.mxu0 0
        %609 = vmatpush.bf16.msra.mxu0 %v600
        %610 = vmatmul.bf16.gmra.mxu0 %v596
        %v611 = vpop.f32.mrf.mxu0
        %v612 = vadd.f32 0.0, %v611
        %v613 = vpop.f32.mrf.mxu0
        %614 = vdwg.mxu0
        %615 = vst.msk [vmem:[#allocation2] sm:$0xff] %vm555, %v612
        %617 = vrot.lane.b32.xlu0 %v554, 120
        %v618 = vpop.permute.xlu0 %617
        %619 = vrot.lane.b32.xlu0 %v553, 120
        %v620 = vpop.permute.xlu0 %619
        %v622 = vsel %vm555, %v618, 0
        %v625 = vsel %vm555, %v620, 0
        %627 = vmatpush.bf16.xpose.msra.mxu0 0
        %628 = vmatpush.bf16.xpose.msra.mxu0 0
        %629 = vmatpush.bf16.xpose.msra.mxu0 0
        %630 = vmatpush.bf16.xpose.msra.mxu0 0
        %631 = vmatpush.bf16.xpose.msra.mxu0 0
        %632 = vmatpush.bf16.xpose.msra.mxu0 0
        %633 = vmatpush.bf16.xpose.msra.mxu0 0
        %634 = vmatpush.bf16.xpose.msra.mxu0 %v625
        %635 = vmatmul.bf16.gmra.mxu0 %v622
        %v636 = vpop.f32.mrf.mxu0
        %v637 = vadd.f32 0.0, %v636
        %v638 = vpop.f32.mrf.mxu0
        %639 = vdwg.mxu0
        %v640 = vmul.f32 %v637, 0.35355338
        %v641 = vadd.f32 %v640, %v489
        %v642 = vsel %vm555, %v641, -inf
        %643 = vmax.xlane.f32.xlu0 %v642
        %v644 = vpop.xlane.xlu0 %643
        %v645 = vsub.f32 %v641, %v644
        %v646 = vmul.f32 %v645, 1.442695
        %v647 = vpow.pop %v646
        %v648 = vsel %vm555, %v647, 0.0
        %649 = vadd.xlane.f32.xlu0 %v648
        %v650 = vpop.xlane.xlu0 %649
        %v651 = vrcp.pop %v650
        %v652 = vmul.f32 %v647, %v651
        %654 = vrot.lane.b32.xlu0 %v652, 8
        %v655 = vpop.permute.xlu0 %654
        %vm657 = vcmask 130112
        %658 = vst.msk [vmem:[%s478] sm:$0xff] %vm657, %v655
        %v659 = vpack.c.bf16 %v652, %v652
        %660 = vrot.lane.b32.xlu0 %v592, 88
        %v661 = vpop.permute.xlu0 %660
        %v663 = vsel %vm555, %v659, 0
        %v666 = vsel %vm598, %v661, 0
        %668 = vmatpush.bf16.msra.mxu0 0
        %669 = vmatpush.bf16.msra.mxu0 0
        %670 = vmatpush.bf16.msra.mxu0 0
        %671 = vmatpush.bf16.msra.mxu0 0
        %672 = vmatpush.bf16.msra.mxu0 0
        %673 = vmatpush.bf16.msra.mxu0 0
        %674 = vmatpush.bf16.msra.mxu0 0
        %675 = vmatpush.bf16.msra.mxu0 %v666
        %676 = vmatmul.bf16.gmra.mxu0 %v663
        %v677 = vpop.f32.mrf.mxu0
        %v678 = vadd.f32 0.0, %v677
        %v679 = vpop.f32.mrf.mxu0
        %680 = vdwg.mxu0
        %682 = vrot.lane.b32.xlu0 %v678, 8
        %v683 = vpop.permute.xlu0 %682
        %685 = vst.msk [vmem:[#allocation2] sm:$0xff] %vm657, %v683
        %686 = vrot.lane.b32.xlu0 %v554, 112
        %v687 = vpop.permute.xlu0 %686
        %688 = vrot.lane.b32.xlu0 %v553, 112
        %v689 = vpop.permute.xlu0 %688
        %v691 = vsel %vm555, %v687, 0
        %v694 = vsel %vm555, %v689, 0
        %696 = vmatpush.bf16.xpose.msra.mxu0 0
        %697 = vmatpush.bf16.xpose.msra.mxu0 0
        %698 = vmatpush.bf16.xpose.msra.mxu0 0
        %699 = vmatpush.bf16.xpose.msra.mxu0 0
        %700 = vmatpush.bf16.xpose.msra.mxu0 0
        %701 = vmatpush.bf16.xpose.msra.mxu0 0
        %702 = vmatpush.bf16.xpose.msra.mxu0 0
        %703 = vmatpush.bf16.xpose.msra.mxu0 %v694
        %704 = vmatmul.bf16.gmra.mxu0 %v691
        %v705 = vpop.f32.mrf.mxu0
        %v706 = vadd.f32 0.0, %v705
        %v707 = vpop.f32.mrf.mxu0
        %708 = vdwg.mxu0
        %v709 = vmul.f32 %v706, 0.35355338
        %v710 = vadd.f32 %v709, %v489
        %v711 = vsel %vm555, %v710, -inf
        %712 = vmax.xlane.f32.xlu0 %v711
        %v713 = vpop.xlane.xlu0 %712
        %v714 = vsub.f32 %v710, %v713
        %v715 = vmul.f32 %v714, 1.442695
        %v716 = vpow.pop %v715
        %v717 = vsel %vm555, %v716, 0.0
        %718 = vadd.xlane.f32.xlu0 %v717
        %v719 = vpop.xlane.xlu0 %718
        %v720 = vrcp.pop %v719
        %v721 = vmul.f32 %v716, %v720
        %723 = vrot.lane.b32.xlu0 %v721, 16
        %v724 = vpop.permute.xlu0 %723
        %vm726 = vcmask 195712
        %727 = vst.msk [vmem:[%s478] sm:$0xff] %vm726, %v724
        %v728 = vpack.c.bf16 %v721, %v721
        %729 = vrot.lane.b32.xlu0 %v592, 80
        %v730 = vpop.permute.xlu0 %729
        %v732 = vsel %vm555, %v728, 0
        %v735 = vsel %vm598, %v730, 0
        %737 = vmatpush.bf16.msra.mxu0 0
        %738 = vmatpush.bf16.msra.mxu0 0
        %739 = vmatpush.bf16.msra.mxu0 0
        %740 = vmatpush.bf16.msra.mxu0 0
        %741 = vmatpush.bf16.msra.mxu0 0
        %742 = vmatpush.bf16.msra.mxu0 0
        %743 = vmatpush.bf16.msra.mxu0 0
        %744 = vmatpush.bf16.msra.mxu0 %v735
        %745 = vmatmul.bf16.gmra.mxu0 %v732
        %v746 = vpop.f32.mrf.mxu0
        %v747 = vadd.f32 0.0, %v746
        %v748 = vpop.f32.mrf.mxu0
        %749 = vdwg.mxu0
        %751 = vrot.lane.b32.xlu0 %v747, 16
        %v752 = vpop.permute.xlu0 %751
        %754 = vst.msk [vmem:[#allocation2] sm:$0xff] %vm726, %v752
        %755 = vrot.lane.b32.xlu0 %v554, 104
        %v756 = vpop.permute.xlu0 %755
        %757 = vrot.lane.b32.xlu0 %v553, 104
        %v758 = vpop.permute.xlu0 %757
        %v760 = vsel %vm555, %v756, 0
        %v763 = vsel %vm555, %v758, 0
        %765 = vmatpush.bf16.xpose.msra.mxu0 0
        %766 = vmatpush.bf16.xpose.msra.mxu0 0
        %767 = vmatpush.bf16.xpose.msra.mxu0 0
        %768 = vmatpush.bf16.xpose.msra.mxu0 0
        %769 = vmatpush.bf16.xpose.msra.mxu0 0
        %770 = vmatpush.bf16.xpose.msra.mxu0 0
        %771 = vmatpush.bf16.xpose.msra.mxu0 0
        %772 = vmatpush.bf16.xpose.msra.mxu0 %v763
        %773 = vmatmul.bf16.gmra.mxu0 %v760
        %v774 = vpop.f32.mrf.mxu0
        %v775 = vadd.f32 0.0, %v774
        %v776 = vpop.f32.mrf.mxu0
        %777 = vdwg.mxu0
        %v778 = vmul.f32 %v775, 0.35355338
        %v779 = vadd.f32 %v778, %v489
        %v780 = vsel %vm555, %v779, -inf
        %781 = vmax.xlane.f32.xlu0 %v780
        %v782 = vpop.xlane.xlu0 %781
        %v783 = vsub.f32 %v779, %v782
        %v784 = vmul.f32 %v783, 1.442695
        %v785 = vpow.pop %v784
        %v786 = vsel %vm555, %v785, 0.0
        %787 = vadd.xlane.f32.xlu0 %v786
        %v788 = vpop.xlane.xlu0 %787
        %v789 = vrcp.pop %v788
        %v790 = vmul.f32 %v785, %v789
        %792 = vrot.lane.b32.xlu0 %v790, 24
        %v793 = vpop.permute.xlu0 %792
        %vm795 = vcmask 261312
        %796 = vst.msk [vmem:[%s478] sm:$0xff] %vm795, %v793
        %v797 = vpack.c.bf16 %v790, %v790
        %798 = vrot.lane.b32.xlu0 %v592, 72
        %v799 = vpop.permute.xlu0 %798
        %v801 = vsel %vm555, %v797, 0
        %v804 = vsel %vm598, %v799, 0
        %806 = vmatpush.bf16.msra.mxu0 0
        %807 = vmatpush.bf16.msra.mxu0 0
        %808 = vmatpush.bf16.msra.mxu0 0
        %809 = vmatpush.bf16.msra.mxu0 0
        %810 = vmatpush.bf16.msra.mxu0 0
        %811 = vmatpush.bf16.msra.mxu0 0
        %812 = vmatpush.bf16.msra.mxu0 0
        %813 = vmatpush.bf16.msra.mxu0 %v804
        %814 = vmatmul.bf16.gmra.mxu0 %v801
        %v815 = vpop.f32.mrf.mxu0
        %v816 = vadd.f32 0.0, %v815
        %v817 = vpop.f32.mrf.mxu0
        %818 = vdwg.mxu0
        %820 = vrot.lane.b32.xlu0 %v816, 24
        %v821 = vpop.permute.xlu0 %820
        %823 = vst.msk [vmem:[#allocation2] sm:$0xff] %vm795, %v821
        %v824 = vld [vmem:[#allocation2] sm:$0xff]
        %v825 = vpack.c.bf16 %v824, %v824
        %v826 = vld [vmem:[#allocation6] sm:$0xf]
        %v827 = vld [vmem:[#allocation6 + $0x4] sm:$0xf]
        %v828 = vld [vmem:[#allocation6 + $0x8] sm:$0xf]
        %v829 = vld [vmem:[#allocation6 + $0xc] sm:$0xf]
        %v834 = vunpack.c.l.b16 %v826
        %v835 = vunpack.c.l.b16 %v827
        %v836 = vunpack.c.l.b16 %v828
        %v837 = vunpack.c.l.b16 %v829
        %v838 = vpack.c.b16 %v835, %v834
        %v839 = vpack.c.b16 %v837, %v836
        %v843 = vsel %vm507, %v825, 0
        %845 = vmatpush.bf16.msra.mxu0 0
        %846 = vmatpush.bf16.msra.mxu0 0
        %847 = vmatpush.bf16.msra.mxu0 0
        %848 = vmatpush.bf16.msra.mxu0 0
        %849 = vmatpush.bf16.msra.mxu0 0
        %850 = vmatpush.bf16.msra.mxu0 0
        %851 = vmatpush.bf16.msra.mxu0 %v839
        %852 = vmatpush.bf16.msra.mxu0 %v838
        %853 = vmatmul.bf16.gmra.mxu0 %v843
        %v854 = vpop.f32.mrf.mxu0
        %v855 = vadd.f32 %v488, %v854
        %v856 = vpop.f32.mrf.mxu0
        %857 = vdwg.mxu0
        %v858 = vld [vmem:[%s5] sm:$0x1]
        %v859 = vld [vmem:[%s6] sm:$0x1]
        %v860 = vsel %vm507, %v855, 0.0
        %861 = vadd.xlane.f32.xlu0 %v860
        %v862 = vpop.xlane.xlu0 %861
        %v863 = vmul.f32 %v862, 0.03125
        %v864 = vmul.f32 %v855, %v855
        %v865 = vsel %vm507, %v864, 0.0
        %866 = vadd.xlane.f32.xlu0 %v865
        %v867 = vpop.xlane.xlu0 %866
        %v868 = vmul.f32 %v867, 0.03125
        %v869 = vmul.f32 %v863, %v863
        %v870 = vsub.f32 %v868, %v869
        %v871 = vsub.f32 %v855, %v863
        %v872 = vadd.f32 %v870, 1e-05
        %v873 = vrsqrt.pop %v872
        %v874 = vmul.f32 %v873, %v872
        %v875 = vmul.f32 %v874, %v873
        %v876 = vmul.f32 0.5, %v875
        %v877 = vsub.f32 1.5, %v876
        %v878 = vmul.f32 %v873, %v877
        %vm879 = vweird.f32 %v872
        %vm880 = vweird.f32 %v873
        %vm881 = vmor %vm879, %vm880
        %v882 = vsel %vm881, %v873, %v878
        %v883 = vmul.f32 %v871, %v882
        %v885 = vperm.slane %v858, 0
        %v887 = vmul.f32 %v883, %v885
        %v889 = vperm.slane %v859, 0
        %v891 = vadd.f32 %v887, %v889
        %v892 = vpack.c.bf16 %v891, %v891
        %v893 = vld [vmem:[#allocation8] sm:$0xf]
        %v894 = vld [vmem:[#allocation8 + $0x4] sm:$0xf]
        %v895 = vld [vmem:[#allocation8 + $0x8] sm:$0xf]
        %v896 = vld [vmem:[#allocation8 + $0xc] sm:$0xf]
        %v901 = vunpack.c.l.b16 %v893
        %v902 = vunpack.c.l.b16 %v894
        %v903 = vunpack.c.l.b16 %v895
        %v904 = vunpack.c.l.b16 %v896
        %v905 = vpack.c.b16 %v902, %v901
        %v906 = vpack.c.b16 %v904, %v903
        %v910 = vsel %vm507, %v892, 0
        %912 = vmatpush.bf16.msra.mxu0 0
        %913 = vmatpush.bf16.msra.mxu0 0
        %914 = vmatpush.bf16.msra.mxu0 0
        %915 = vmatpush.bf16.msra.mxu0 0
        %916 = vmatpush.bf16.msra.mxu0 0
        %917 = vmatpush.bf16.msra.mxu0 0
        %918 = vmatpush.bf16.msra.mxu0 %v906
        %919 = vmatpush.bf16.msra.mxu0 %v905
        %920 = vmatmul.bf16.gmra.mxu0 %v910
        %v921 = vpop.f32.mrf.mxu0
        %v922 = vadd.f32 0.0, %v921
        %v923 = vpop.f32.mrf.mxu0
        %924 = vdwg.mxu0
        %v925 = vmax.f32 %v922, 0.0
        %v926 = vpack.c.bf16 %v925, %v925
        %v927 = vld [vmem:[%s8] sm:$0xf]
        %v928 = vld [vmem:[%s8 + $0x4] sm:$0xf]
        %v929 = vld [vmem:[%s8 + $0x8] sm:$0xf]
        %v930 = vld [vmem:[%s8 + $0xc] sm:$0xf]
        %v931 = vld [vmem:[%s8 + $0x10] sm:$0xf]
        %v932 = vld [vmem:[%s8 + $0x14] sm:$0xf]
        %v933 = vld [vmem:[%s8 + $0x18] sm:$0xf]
        %v934 = vld [vmem:[%s8 + $0x1c] sm:$0xf]
        %v943 = vunpack.c.l.b16 %v927
        %v944 = vunpack.c.l.b16 %v928
        %v945 = vunpack.c.l.b16 %v929
        %v946 = vunpack.c.l.b16 %v930
        %v947 = vunpack.c.l.b16 %v931
        %v948 = vunpack.c.l.b16 %v932
        %v949 = vunpack.c.l.b16 %v933
        %v950 = vunpack.c.l.b16 %v934
        %v951 = vpack.c.b16 %v944, %v943
        %v952 = vpack.c.b16 %v946, %v945
        %v953 = vpack.c.b16 %v948, %v947
        %v954 = vpack.c.b16 %v950, %v949
        %vm959 = vcmask 523264
        %v961 = vsel %vm959, %v926, 0
        %963 = vmatpush.bf16.msra.mxu0 0
        %964 = vmatpush.bf16.msra.mxu0 0
        %965 = vmatpush.bf16.msra.mxu0 0
        %966 = vmatpush.bf16.msra.mxu0 0
        %967 = vmatpush.bf16.msra.mxu0 %v954
        %968 = vmatpush.bf16.msra.mxu0 %v953
        %969 = vmatpush.bf16.msra.mxu0 %v952
        %970 = vmatpush.bf16.msra.mxu0 %v951
        %971 = vmatmul.bf16.gmra.mxu0 %v961
        %v972 = vpop.f32.mrf.mxu0
        %v973 = vadd.f32 %v891, %v972
        %v974 = vpop.f32.mrf.mxu0
        %975 = vdwg.mxu0
        %v976 = vld [vmem:[%s9] sm:$0x1]
        %v977 = vld [vmem:[%s10] sm:$0x1]
        %v978 = vsel %vm507, %v973, 0.0
        %979 = vadd.xlane.f32.xlu0 %v978
        %v980 = vpop.xlane.xlu0 %979
        %v981 = vmul.f32 %v980, 0.03125
        %v982 = vmul.f32 %v973, %v973
        %v983 = vsel %vm507, %v982, 0.0
        %984 = vadd.xlane.f32.xlu0 %v983
        %v985 = vpop.xlane.xlu0 %984
        %v986 = vmul.f32 %v985, 0.03125
        %v987 = vmul.f32 %v981, %v981
        %v988 = vsub.f32 %v986, %v987
        %v989 = vsub.f32 %v973, %v981
        %v990 = vadd.f32 %v988, 1e-05
        %v991 = vrsqrt.pop %v990
        %v992 = vmul.f32 %v991, %v990
        %v993 = vmul.f32 %v992, %v991
        %v994 = vmul.f32 0.5, %v993
        %v995 = vsub.f32 1.5, %v994
        %v996 = vmul.f32 %v991, %v995
        %vm997 = vweird.f32 %v990
        %vm998 = vweird.f32 %v991
        %vm999 = vmor %vm997, %vm998
        %v1000 = vsel %vm999, %v991, %v996
        %v1001 = vmul.f32 %v989, %v1000
        %v1003 = vperm.slane %v976, 0
        %v1005 = vmul.f32 %v1001, %v1003
        %v1007 = vperm.slane %v977, 0
        %v1009 = vadd.f32 %v1005, %v1007
        %1010 = vst.msk [vmem:[%s471] sm:$0xff] %vm507, %v1009
        %s1011 = sand.u32 %s281, 1
        %s1012 = scalar_lea.sflag [#allocation5], %s1011
        %s1013 = sand.u32 %s281, 1
        %s1014 = smul.addr %s1013, 8
        %s1015 = scalar_lea.vmem [#allocation9], %s1014
        %s1016 = sand.u32 %s307, 1
        %s1017 = scalar_lea.sflag [#allocation11], %s1016
        %s1018 = sand.u32 %s307, 1
        %s1019 = smul.addr %s1018, 8
        %s1020 = scalar_lea.vmem [#allocation10], %s1019
        // Predicated region
        $region77: #{tpu_custom_call.1} parent=63 // pred_check
          %p1021 = pneg %p291
        $region78: #{tpu_custom_call.1} parent=63 // pred_check_branch
          %1023 = sbr.rel (%p1021) target = $region80
        $region79: #{tpu_custom_call.1} parent=63 // pred_region
          %1025 = vsyncadd %s1012, 0
          %s1026 = smul.addr %s32, 8
          %s1027 = scalar_lea.hbm %s11, %s1026
          %s1029 = sshll.u32 %s1015, 4
          %s1030 = int_to_ptr.vmem [resolvable:$true] %s1029
          %s1031 = sshll.u32 %s1027, 4
          %s1032 = int_to_ptr.hbm [resolvable:$true] %s1031
          %1034 = dma.vmem_to_hbm [thread:$0]  %s1030, 128, %s1032, %s1012
        $region80: #{tpu_custom_call.1} parent=63 // pred_fallthru
          _
        // Predicated region
        $region81: #{tpu_custom_call.1} parent=63 // pred_check
          %p1035 = pneg %p317
        $region82: #{tpu_custom_call.1} parent=63 // pred_check_branch
          %1037 = sbr.rel (%p1035) target = $region84
        $region83: #{tpu_custom_call.1} parent=63 // pred_region
          %1039 = vsyncadd %s1017, 0
          %s1040 = smul.addr %s32, 8
          %s1041 = scalar_lea.hbm %s12, %s1040
          %s1043 = sshll.u32 %s1020, 4
          %s1044 = int_to_ptr.vmem [resolvable:$true] %s1043
          %s1045 = sshll.u32 %s1041, 4
          %s1046 = int_to_ptr.hbm [resolvable:$true] %s1045
          %1048 = dma.vmem_to_hbm [thread:$0]  %s1044, 128, %s1046, %s1017
        $region84: #{tpu_custom_call.1} parent=63 // pred_fallthru
          _
      $region64: #{tpu_custom_call.1} parent=5 // pred_fallthru
        _
      %p1049 = scmp.le.s32.totalorder 2, %s27
      // Predicated region
      $region85: #{tpu_custom_call.1} parent=5 // pred_check
        %p1050 = pneg %p1049
      $region86: #{tpu_custom_call.1} parent=5 // pred_check_branch
        %1052 = sbr.rel (%p1050) target = $region88
      $region87: #{tpu_custom_call.1} parent=5 // pred_region
        %s1053 = ssub.s32 %s27, 2
        // Predicated region
        $region89: #{tpu_custom_call.1} parent=87 // pred_check
          %p1054 = pneg %p297
        $region90: #{tpu_custom_call.1} parent=87 // pred_check_branch
          %1056 = sbr.rel (%p1054) target = $region92
        $region91: #{tpu_custom_call.1} parent=87 // pred_region
          %s1057 = sand.u32 %s282, 1
          %s1058 = scalar_lea.sflag [#allocation5], %s1057
          %s1059 = sand.u32 %s282, 1
          %s1060 = smul.addr %s1059, 8
          %s1061 = scalar_lea.vmem [#allocation9], %s1060
          %1063 = dma.done %s1058, 128
        $region92: #{tpu_custom_call.1} parent=87 // pred_fallthru
          _
        // Predicated region
        $region93: #{tpu_custom_call.1} parent=87 // pred_check
          %p1064 = pneg %p323
        $region94: #{tpu_custom_call.1} parent=87 // pred_check_branch
          %1066 = sbr.rel (%p1064) target = $region96
        $region95: #{tpu_custom_call.1} parent=87 // pred_region
          %s1067 = sand.u32 %s308, 1
          %s1068 = scalar_lea.sflag [#allocation11], %s1067
          %s1069 = sand.u32 %s308, 1
          %s1070 = smul.addr %s1069, 8
          %s1071 = scalar_lea.vmem [#allocation10], %s1070
          %1073 = dma.done %s1068, 128
        $region96: #{tpu_custom_call.1} parent=87 // pred_fallthru
          _
      $region88: #{tpu_custom_call.1} parent=5 // pred_fallthru
        _
    $region6: #{tpu_custom_call.1} parent=1 // loop_footer
      %s31 = sadd.s32 1, %s27
    $region7: #{tpu_custom_call.1} parent=1 // loop_footer_branch
      %26 = sbr.rel target = $region3
    $region8: #{tpu_custom_call.1} parent=1 // loop_exit
      _
    %1074 = vsyncpa [#allocation4], 1
    %s1075 = scalar_lea.sflag [#allocation4], 1
    %1076 = vsyncpa %s1075, 1
    %1077 = vsyncpa [#allocation7], 1
    %1078 = vsyncpa [#allocation5], 1
    %s1079 = scalar_lea.sflag [#allocation5], 1
    %1080 = vsyncpa %s1079, 1
    %1081 = vsyncpa [#allocation11], 1
    %s1082 = scalar_lea.sflag [#allocation11], 1
    %1083 = vsyncpa %s1082, 1

</llo_original>
